<compile_context>
chip_gen: v7x
topology: tpu7x:2x2x1
jax: 0.10.0
libtpu: 0.0.40
codegen_flags: <defaults>
</compile_context>

<pallas_src>
import functools
import math

import jax
import jax.numpy as jnp
from jax.experimental import pallas as pl
from jax.experimental.pallas import tpu as pltpu

LANE = 128   # TPU lane width (last-dim vreg size)
SUB = 8      # sublane granularity

# Packed weight slab layout (rows x 128 lanes), zero padded:
#   rows   0:128 -> W1 (input_size valid rows, hidden valid cols)
#   rows 128:256 -> W2 (hidden x hidden valid)
#   rows 256:384 -> W3 (hidden x output valid)
#   row  384     -> b1   (rows 384:392 reserved, 8-aligned)
#   row  392     -> b2
#   row  400     -> b3
W1_OFF, W2_OFF, W3_OFF = 0, 128, 256
B1_OFF, B2_OFF, B3_OFF = 384, 392, 400
SLAB_ROWS = 408  # multiple of 8


def _round_up(n, m):
    return (n + m - 1) // m * m


def intent_mlp_kernel(x_ref, slab_ref, o_ref):
    """Fused 3-layer MLP: (Linear -> ReLU) x2 -> Linear on one batch tile."""
    x = x_ref[...]                                   # (tb, d_in), compute dtype
    d_in = x_ref.shape[-1]
    cdtype = x.dtype

    w1 = slab_ref[W1_OFF:W1_OFF + d_in, :]           # (d_in, 128)
    w2 = slab_ref[W2_OFF:W2_OFF + LANE, :]           # (128, 128)
    w3 = slab_ref[W3_OFF:W3_OFF + LANE, :]           # (128, 128)
    b1 = slab_ref[B1_OFF:B1_OFF + 1, :]              # (1, 128)
    b2 = slab_ref[B2_OFF:B2_OFF + 1, :]
    b3 = slab_ref[B3_OFF:B3_OFF + 1, :]

    # MXU operands may be bf16 (native rate, half the DMA bytes); accumulation
    # is always f32, and bias add / ReLU run on the f32 dot output (VPU), so
    # the v5e "no bf16 VPU" limitation never applies.
    h1 = jnp.dot(x, w1, preferred_element_type=jnp.float32) + b1
    h1 = jnp.maximum(h1, 0.0)
    h2 = jnp.dot(h1.astype(cdtype), w2, preferred_element_type=jnp.float32) + b2
    h2 = jnp.maximum(h2, 0.0)
    out = jnp.dot(h2.astype(cdtype), w3, preferred_element_type=jnp.float32) + b3

    # Narrow (masked) store: only the padded-to-8 valid output lanes go back
    # to HBM instead of all 128 -> ~16x less writeback traffic.
    o_ref[...] = out[:, :o_ref.shape[-1]].astype(o_ref.dtype)


@functools.partial(jax.jit, static_argnames=("output_size", "block_b"))
def intent_model_forward(x, slab, *, output_size, block_b=1024):
    """Run the fused MLP as a batch-tiled Pallas kernel. slab.dtype sets the
    MXU operand dtype (bf16 default from pack_params, f32 for strict checks)."""
    B, d_in = x.shape
    assert d_in <= LANE and output_size <= LANE
    compute_dtype = slab.dtype
    x = x.astype(compute_dtype)

    # Batch tile: large (>=512 preferred) to amortize the ~0.35us per-grid-step
    # pipeline overhead, a multiple of 8, capped at 4096 rows to stay well
    # inside v7x's 64 MiB VMEM, and sized so the grid has >=2 steps whenever B
    # allows it so the "parallel" batch axis can use both v7x TensorCores.
    block_b = _round_up(max(min(block_b, 4096), SUB), SUB)
    tb = max(SUB, min(block_b, _round_up(pl.cdiv(B, 2), SUB)))
    grid_b = pl.cdiv(B, tb)          # partial last tile: OOB rows dropped

    out_cols = _round_up(output_size, SUB)

    out = pl.pallas_call(
        intent_mlp_kernel,
        out_shape=jax.ShapeDtypeStruct((B, out_cols), jnp.float32),
        grid_spec=pltpu.PrefetchScalarGridSpec(
            num_scalar_prefetch=0,
            grid=(grid_b,),
            in_specs=[
                # x at its natural (B, d_in) shape: last block dim equals the
                # full array extent, so no wrapper-side lane padding / extra
                # HBM round-trip is needed.
                pl.BlockSpec((tb, d_in), lambda i: (i, 0)),
                # Constant index_map -> the packed weight slab is DMA'd once
                # and stays VMEM-resident across all batch tiles.
                pl.BlockSpec((SLAB_ROWS, LANE), lambda i: (0, 0)),
            ],
            out_specs=pl.BlockSpec((tb, out_cols), lambda i: (i, 0)),
        ),
        compiler_params=pltpu.CompilerParams(
            dimension_semantics=("parallel",)),
    )(x, slab)
    return out[:, :output_size]


def xavier_uniform(key, fan_in, fan_out):
    bound = math.sqrt(6.0 / (fan_in + fan_out))
    # (fan_in, fan_out) layout so the kernel does x @ W directly.
    return jax.random.uniform(key, (fan_in, fan_out), jnp.float32, -bound, bound)


def linear_bias(key, fan_in, fan_out):
    # PyTorch nn.Linear default bias init: U(-1/sqrt(fan_in), 1/sqrt(fan_in)).
    bound = 1.0 / math.sqrt(fan_in)
    return jax.random.uniform(key, (fan_out,), jnp.float32, -bound, bound)


def init_params(key, input_size, hidden_size, output_size):
    ks = jax.random.split(key, 6)
    w1 = xavier_uniform(ks[0], input_size, hidden_size)
    b1 = linear_bias(ks[1], input_size, hidden_size)
    w2 = xavier_uniform(ks[2], hidden_size, hidden_size)
    b2 = linear_bias(ks[3], hidden_size, hidden_size)
    w3 = xavier_uniform(ks[4], hidden_size, output_size)
    b3 = linear_bias(ks[5], hidden_size, output_size)
    return (w1, b1, w2, b2, w3, b3)


def pack_params(params, dtype=jnp.bfloat16):
    """Zero-pad and pack all weights/biases into one lane-dense slab.

    bf16 (default) is the right operand dtype on v5e/v6e/v7x: native MXU rate
    and half the HBM bytes, with f32 accumulation in-kernel (tolerance ~1e-2).
    Pass dtype=jnp.float32 for strict 1e-5 agreement with the f32 reference.
    """
    w1, b1, w2, b2, w3, b3 = params
    slab = jnp.zeros((SLAB_ROWS, LANE), jnp.float32)
    slab = slab.at[W1_OFF:W1_OFF + w1.shape[0], :w1.shape[1]].set(w1)
    slab = slab.at[W2_OFF:W2_OFF + w2.shape[0], :w2.shape[1]].set(w2)
    slab = slab.at[W3_OFF:W3_OFF + w3.shape[0], :w3.shape[1]].set(w3)
    slab = slab.at[B1_OFF, :b1.shape[0]].set(b1)
    slab = slab.at[B2_OFF, :b2.shape[0]].set(b2)
    slab = slab.at[B3_OFF, :b3.shape[0]].set(b3)
    return slab.astype(dtype)


def reference_forward(x, params):
    w1, b1, w2, b2, w3, b3 = params
    h1 = jnp.maximum(x @ w1 + b1, 0.0)
    h2 = jnp.maximum(h1 @ w2 + b2, 0.0)
    return h2 @ w3 + b3


def intent_model_apply(x, params, slab=None, *, min_pallas_batch=512, block_b=1024):
    """Dispatch: plain XLA fusion for tiny batches (launch + slab DMA dominate
    there), fused Pallas kernel once the batch amortizes them."""
    output_size = params[-1].shape[0]
    if x.shape[0] < min_pallas_batch:
        return reference_forward(x, params)
    if slab is None:
        slab = pack_params(params)
    return intent_model_forward(x, slab, output_size=output_size, block_b=block_b)


if __name__ == "__main__":
    # Shapes implied by the module: input_size from train_X, hidden_size=10,
    # output_size from train_Y.  batch=2043 (not a multiple of 8) exercises a
    # >=2-step parallel grid (v7x megacore) and the partial last batch tile.
    batch = 2043
    input_size = 32
    hidden_size = 10
    output_size = 6

    key = jax.random.PRNGKey(0)
    k_x, k_p = jax.random.split(key)
    x = jax.random.normal(k_x, (batch, input_size), jnp.float32)
    params = init_params(k_p, input_size, hidden_size, output_size)
    ref = reference_forward(x, params)

    # Default bf16-operand path (halved DMA bytes, native MXU dtype, f32 acc).
    slab_bf16 = pack_params(params)
    out_bf16 = jax.block_until_ready(
        intent_model_forward(x, slab_bf16, output_size=output_size))
    assert out_bf16.shape == (batch, output_size)
    assert jnp.allclose(out_bf16, ref, atol=5e-2, rtol=5e-2)

    # f32-operand path for strict numerics against the reference.
    slab_f32 = pack_params(params, dtype=jnp.float32)
    out_f32 = jax.block_until_ready(
        intent_model_forward(x, slab_f32, output_size=output_size))
    assert out_f32.shape == (batch, output_size)
    assert jnp.allclose(out_f32, ref, atol=1e-5, rtol=1e-5)

    # Tiny batches fall back to plain XLA (the kernel doesn't pay for itself).
    out_small = jax.block_until_ready(intent_model_apply(x[:16], params))
    assert jnp.allclose(out_small, ref[:16], atol=1e-5, rtol=1e-5)

    print("KERNEL_OK")
</pallas_src>

<mosaic_0001>
module attributes {stable_mosaic.version = 11 : i64} {
  func.func @intent_mlp_kernel(%arg0: i32, %arg1: memref<1024x32xbf16, #tpu.memory_space<vmem>>, %arg2: memref<408x128xbf16, #tpu.memory_space<vmem>>, %arg3: memref<1024x8xf32, #tpu.memory_space<vmem>>) attributes {dimension_semantics = [#tpu.dimension_semantics<parallel>], iteration_bounds = array<i64: 2>, scalar_prefetch = 0 : i64, scratch_operands = 0 : i64, tpu.core_type = #tpu.core_type<tc>, window_params = [{transform_indices = @transform_0, window_bounds = array<i64: 1024, 32>}, {pipeline_mode = #tpu.pipeline_mode<synchronous>, transform_indices = @transform_1, window_bounds = array<i64: 408, 128>}, {transform_indices = @transform_2, window_bounds = array<i64: 1024, 8>}]} {
    %c0 = arith.constant 0 : index
    %c0_0 = arith.constant 0 : index
    %0 = vector.load %arg1[%c0, %c0_0] : memref<1024x32xbf16, #tpu.memory_space<vmem>>, vector<1024x32xbf16>
    %c0_1 = arith.constant 0 : index
    %c0_2 = arith.constant 0 : index
    %1 = vector.load %arg2[%c0_1, %c0_2] : memref<408x128xbf16, #tpu.memory_space<vmem>>, vector<32x128xbf16>
    %c128 = arith.constant 128 : index
    %c0_3 = arith.constant 0 : index
    %2 = vector.load %arg2[%c128, %c0_3] : memref<408x128xbf16, #tpu.memory_space<vmem>>, vector<128x128xbf16>
    %c256 = arith.constant 256 : index
    %c0_4 = arith.constant 0 : index
    %3 = vector.load %arg2[%c256, %c0_4] : memref<408x128xbf16, #tpu.memory_space<vmem>>, vector<128x128xbf16>
    %c384 = arith.constant 384 : index
    %c0_5 = arith.constant 0 : index
    %4 = vector.load %arg2[%c384, %c0_5] : memref<408x128xbf16, #tpu.memory_space<vmem>>, vector<1x128xbf16>
    %c392 = arith.constant 392 : index
    %c0_6 = arith.constant 0 : index
    %5 = vector.load %arg2[%c392, %c0_6] : memref<408x128xbf16, #tpu.memory_space<vmem>>, vector<1x128xbf16>
    %c400 = arith.constant 400 : index
    %c0_7 = arith.constant 0 : index
    %6 = vector.load %arg2[%c400, %c0_7] : memref<408x128xbf16, #tpu.memory_space<vmem>>, vector<1x128xbf16>
    %cst = arith.constant dense<0.000000e+00> : vector<1024x128xf32>
    %7 = tpu.matmul %0, %1, %cst {dimension_numbers = #tpu.dot_dimension_numbers<[1], [0], [0], [1], [0, 0, 1, 1], [], []>} : vector<1024x32xbf16>, vector<32x128xbf16>, vector<1024x128xf32> -> vector<1024x128xf32>
    %8 = arith.extf %4 : vector<1x128xbf16> to vector<1x128xf32>
    %9 = vector.broadcast %8 : vector<1x128xf32> to vector<1024x128xf32>
    %10 = arith.addf %7, %9 : vector<1024x128xf32>
    %cst_8 = arith.constant 0.000000e+00 : f32
    %11 = vector.broadcast %cst_8 : f32 to vector<1024x128xf32>
    %12 = arith.maximumf %10, %11 : vector<1024x128xf32>
    %13 = arith.truncf %12 : vector<1024x128xf32> to vector<1024x128xbf16>
    %cst_9 = arith.constant dense<0.000000e+00> : vector<1024x128xf32>
    %14 = tpu.matmul %13, %2, %cst_9 {dimension_numbers = #tpu.dot_dimension_numbers<[1], [0], [0], [1], [0, 0, 1, 1], [], []>} : vector<1024x128xbf16>, vector<128x128xbf16>, vector<1024x128xf32> -> vector<1024x128xf32>
    %15 = arith.extf %5 : vector<1x128xbf16> to vector<1x128xf32>
    %16 = vector.broadcast %15 : vector<1x128xf32> to vector<1024x128xf32>
    %17 = arith.addf %14, %16 : vector<1024x128xf32>
    %cst_10 = arith.constant 0.000000e+00 : f32
    %18 = vector.broadcast %cst_10 : f32 to vector<1024x128xf32>
    %19 = arith.maximumf %17, %18 : vector<1024x128xf32>
    %20 = arith.truncf %19 : vector<1024x128xf32> to vector<1024x128xbf16>
    %cst_11 = arith.constant dense<0.000000e+00> : vector<1024x128xf32>
    %21 = tpu.matmul %20, %3, %cst_11 {dimension_numbers = #tpu.dot_dimension_numbers<[1], [0], [0], [1], [0, 0, 1, 1], [], []>} : vector<1024x128xbf16>, vector<128x128xbf16>, vector<1024x128xf32> -> vector<1024x128xf32>
    %22 = arith.extf %6 : vector<1x128xbf16> to vector<1x128xf32>
    %23 = vector.broadcast %22 : vector<1x128xf32> to vector<1024x128xf32>
    %24 = arith.addf %21, %23 : vector<1024x128xf32>
    %25 = vector.extract_strided_slice %24 {offsets = [0, 0], sizes = [1024, 8], strides = [1, 1]} : vector<1024x128xf32> to vector<1024x8xf32>
    %c0_12 = arith.constant 0 : index
    %c0_13 = arith.constant 0 : index
    %26 = vector.load %arg3[%c0_12, %c0_13] : memref<1024x8xf32, #tpu.memory_space<vmem>>, vector<1024x8xf32>
    tpu.vector_store %arg3[%c0_12, %c0_13], %25 {strides = array<i32>} : memref<1024x8xf32, #tpu.memory_space<vmem>>, vector<1024x8xf32>,
    return
  }
  func.func @transform_0(%arg0: i32) -> (i32, i32) {
    %c0_i32 = arith.constant 0 : i32
    %c0_i32_0 = arith.constant 0 : i32
    return %arg0, %c0_i32 : i32, i32
  }
  func.func @transform_1(%arg0: i32) -> (i32, i32) {
    %c0_i32 = arith.constant 0 : i32
    %c0_i32_0 = arith.constant 0 : i32
    %c0_i32_1 = arith.constant 0 : i32
    return %c0_i32, %c0_i32_0 : i32, i32
  }
  func.func @transform_2(%arg0: i32) -> (i32, i32) {
    %c0_i32 = arith.constant 0 : i32
    %c0_i32_0 = arith.constant 0 : i32
    return %arg0, %c0_i32 : i32, i32
  }
}

</mosaic_0001>

<llo_original>
// kernel: intent_model_forward.1
$region0: #{intent_model_forward.1}
  #allocation0 [shape = 'u32[]', space=smem, size = 0x4, offset = 0x4, fixed_abs, tag = 'smem constant byte address 0x4 - core index']
  #allocation1 [shape = 'u32[144,128]{1,0:T(1,128)}', space=vmem, size = 0x12000, scoped, tag = 'internal scratch']
  %s0 = inlined_call_operand.vmem [shape: bf16[2043,32], index: 0, kind: input, shape index: {}]
  %s1 = inlined_call_operand.vmem [shape: bf16[408,128], index: 1, kind: input, shape index: {}]
  %s2 = inlined_call_operand.vmem [shape: f32[2043,8], index: 2, kind: output, shape index: {}]
  %s3 = sld [smem:[#allocation0]]
  $region41: #{intent_model_forward.1} parent=0
    _
  %s5 = ssub.s32 1, %s3
  %s6 = scalar_select 0, %s5, %s3
  loop: start=0, step=1, limit=4
  $region2: #{intent_model_forward.1} parent=0 // loop_pre_header
    _
  $region3: #{intent_model_forward.1} parent=0 // loop_header
    %s8 = sphi 0, %s12
    %p9 = scmp.ge.s32.totalorder %s8, 4
    %s18 = sphi 0, %s20
    %s21 = sphi 0, %s18
    %s22 = sphi 0, %s21
    %s38 = sphi 0, %s22
    %s42 = sphi 0, %s42
    %s44 = sphi 0, %s42
    %s45 = sphi 0, %s44
    %s59 = sphi 0, %s45
    %s65 = sphi 0, %s67
    %s68 = sphi 0, %s65
    %s69 = sphi 0, %s68
    %s85 = sphi 0, %s69
  $region4: #{intent_model_forward.1} parent=0 // loop_header_branch
    %11 = sbr.rel (%p9) target = $region8
  $region5: #{intent_model_forward.1} parent=0 // loop_body
    %s13 = ssub.s32 %s8, 1
    %s14 = ssub.s32 %s8, 2
    %s15 = sadd.s32 %s8, 1
    %s16 = ssub.s32 %s8, %s15
    %p17 = scmp.eq.s32.totalorder %s16, 0
    %s19 = sadd.s32 %s18, 1
    %s20 = scalar_select %p17, %s18, %s19
    %p23 = pneg %p17
    %p24 = scmp.eq.s32.totalorder %s8, 1
    %p25 = por %p23, %p24
    %p26 = scmp.ne.s32.totalorder %s18, %s21
    %p27 = scmp.eq.s32.totalorder %s8, 0
    %p28 = por %p26, %p27
    %p29 = scmp.ne.s32.totalorder %s18, %s21
    %p30 = scmp.eq.s32.totalorder %s13, 1
    %p31 = por %p29, %p30
    %p32 = scmp.ne.s32.totalorder %s21, %s22
    %p33 = scmp.eq.s32.totalorder %s13, 0
    %p34 = por %p32, %p33
    %p35 = scmp.ne.s32.totalorder %s21, %s22
    %p36 = scmp.eq.s32.totalorder %s14, 1
    %p37 = por %p35, %p36
    %p39 = scmp.ne.s32.totalorder %s22, %s38
    %p40 = scmp.eq.s32.totalorder %s14, 0
    %p41 = por %p39, %p40
    %s43 = sadd.s32 %s42, 1
    %p46 = scmp.eq.s32.totalorder %s8, 1
    %p47 = scmp.ne.s32.totalorder %s42, %s44
    %p48 = scmp.eq.s32.totalorder %s8, 0
    %p49 = por %p47, %p48
    %p50 = scmp.ne.s32.totalorder %s42, %s44
    %p51 = scmp.eq.s32.totalorder %s13, 1
    %p52 = por %p50, %p51
    %p53 = scmp.ne.s32.totalorder %s44, %s45
    %p54 = scmp.eq.s32.totalorder %s13, 0
    %p55 = por %p53, %p54
    %p56 = scmp.ne.s32.totalorder %s44, %s45
    %p57 = scmp.eq.s32.totalorder %s14, 1
    %p58 = por %p56, %p57
    %p60 = scmp.ne.s32.totalorder %s45, %s59
    %p61 = scmp.eq.s32.totalorder %s14, 0
    %p62 = por %p60, %p61
    %s63 = ssub.s32 %s8, %s15
    %p64 = scmp.eq.s32.totalorder %s63, 0
    %s66 = sadd.s32 %s65, 1
    %s67 = scalar_select %p64, %s65, %s66
    %p70 = pneg %p64
    %p71 = scmp.eq.s32.totalorder %s8, 1
    %p72 = por %p70, %p71
    %p73 = scmp.ne.s32.totalorder %s65, %s68
    %p74 = scmp.eq.s32.totalorder %s8, 0
    %p75 = por %p73, %p74
    %p76 = scmp.ne.s32.totalorder %s65, %s68
    %p77 = scmp.eq.s32.totalorder %s13, 1
    %p78 = por %p76, %p77
    %p79 = scmp.ne.s32.totalorder %s68, %s69
    %p80 = scmp.eq.s32.totalorder %s13, 0
    %p81 = por %p79, %p80
    %p82 = scmp.ne.s32.totalorder %s68, %s69
    %p83 = scmp.eq.s32.totalorder %s14, 1
    %p84 = por %p82, %p83
    %p86 = scmp.ne.s32.totalorder %s69, %s85
    %p87 = scmp.eq.s32.totalorder %s14, 0
    %p88 = por %p86, %p87
    %p89 = scmp.le.s32.totalorder 1, %s8
    %p90 = scmp.lt.s32.totalorder %s8, 3
    %p91 = pnand %p89, %p90
    %p92 = pneg %p91
    // Predicated region
    $region9: #{intent_model_forward.1} parent=5 // pred_check
      _
    $region10: #{intent_model_forward.1} parent=5 // pred_check_branch
      %94 = sbr.rel (%p91) target = $region12
    $region11: #{intent_model_forward.1} parent=5 // pred_region
      %s95 = ssub.s32 %s8, 1
      // Predicated region
      $region13: #{intent_model_forward.1} parent=11 // pred_check
        %p96 = pneg %p55
      $region14: #{intent_model_forward.1} parent=11 // pred_check_branch
        %98 = sbr.rel (%p96) target = $region16
      $region15: #{intent_model_forward.1} parent=11 // pred_region
        _
      $region16: #{intent_model_forward.1} parent=11 // pred_fallthru
        _
    $region12: #{intent_model_forward.1} parent=5 // pred_fallthru
      _
    %p99 = scmp.lt.s32.totalorder %s8, 2
    // Predicated region
    $region17: #{intent_model_forward.1} parent=5 // pred_check
      %p100 = pneg %p99
    $region18: #{intent_model_forward.1} parent=5 // pred_check_branch
      %102 = sbr.rel (%p100) target = $region20
    $region19: #{intent_model_forward.1} parent=5 // pred_region
      // Predicated region
      $region21: #{intent_model_forward.1} parent=19 // pred_check
        %p103 = pneg %p28
      $region22: #{intent_model_forward.1} parent=19 // pred_check_branch
        %105 = sbr.rel (%p103) target = $region24
      $region23: #{intent_model_forward.1} parent=19 // pred_region
        %s106 = smul.u32 128, %s8
        %p107 = scmp.lt.s32.totalorder %s106, 255
        %s108 = scalar_select %p107, %s106, 255
        %s109 = smul.addr %s108, 4
        %s110 = scalar_lea.vmem %s0, %s109
        %s111 = smul.u32 128, %s8
      $region24: #{intent_model_forward.1} parent=19 // pred_fallthru
        _
    $region20: #{intent_model_forward.1} parent=5 // pred_fallthru
      _
    %p112 = scmp.le.s32.totalorder 1, %s8
    %p113 = scmp.lt.s32.totalorder %s8, 3
    %p114 = pnand %p112, %p113
    %p115 = pneg %p114
    // Predicated region
    $region25: #{intent_model_forward.1} parent=5 // pred_check
      _
    $region26: #{intent_model_forward.1} parent=5 // pred_check_branch
      %117 = sbr.rel (%p114) target = $region28
    $region27: #{intent_model_forward.1} parent=5 // pred_region
      %s118 = ssub.s32 %s8, 1
      %s119 = smul.u32 128, %s13
      %p120 = scmp.lt.s32.totalorder %s119, 255
      %s121 = scalar_select %p120, %s119, 255
      %s122 = smul.addr %s121, 4
      %s123 = scalar_lea.vmem %s0, %s122
      %p124 = pneg %p34
      %p125 = pneg %p31
      %p126 = pneg %p55
      %p127 = pneg %p52
      %p128 = pneg %p81
      %p129 = pneg %p78
      %s130 = smul.u32 128, %s13
      %p131 = scmp.lt.s32.totalorder %s130, 255
      %s132 = scalar_select %p131, %s130, 255
      %s133 = smul.addr %s132, 8
      %s134 = scalar_lea.vmem %s2, %s133
      %s135 = smul.u32 128, %s13
      %p136 = scmp.lt.s32.totalorder %s135, 255
      %s137 = scalar_select %p136, %s135, 255
      %s138 = smul.addr %s137, 4
      %s139 = scalar_lea.vmem %s0, %s138
      %s140 = smul.u32 128, %s13
      %s141 = smul.u32 128, %s13
      %p142 = scmp.lt.s32.totalorder %s141, 255
      %s143 = scalar_select %p142, %s141, 255
      %s144 = smul.addr %s143, 8
      %s145 = scalar_lea.vmem %s2, %s144
      %s146 = smul.u32 128, %s13
      %v148 = vld [vmem:[%s139] sm:$0xf]
      %v149 = vld [vmem:[%s139 + $0x4] sm:$0xf]
      %v150 = vld [vmem:[%s139 + $0x8] sm:$0xf]
      %v151 = vld [vmem:[%s139 + $0xc] sm:$0xf]
      %v152 = vld [vmem:[%s139 + $0x10] sm:$0xf]
      %v153 = vld [vmem:[%s139 + $0x14] sm:$0xf]
      %v154 = vld [vmem:[%s139 + $0x18] sm:$0xf]
      %v155 = vld [vmem:[%s139 + $0x1c] sm:$0xf]
      %v156 = vld [vmem:[%s139 + $0x20] sm:$0xf]
      %v157 = vld [vmem:[%s139 + $0x24] sm:$0xf]
      %v158 = vld [vmem:[%s139 + $0x28] sm:$0xf]
      %v159 = vld [vmem:[%s139 + $0x2c] sm:$0xf]
      %v160 = vld [vmem:[%s139 + $0x30] sm:$0xf]
      %v161 = vld [vmem:[%s139 + $0x34] sm:$0xf]
      %v162 = vld [vmem:[%s139 + $0x38] sm:$0xf]
      %v163 = vld [vmem:[%s139 + $0x3c] sm:$0xf]
      %v164 = vld [vmem:[%s139 + $0x40] sm:$0xf]
      %v165 = vld [vmem:[%s139 + $0x44] sm:$0xf]
      %v166 = vld [vmem:[%s139 + $0x48] sm:$0xf]
      %v167 = vld [vmem:[%s139 + $0x4c] sm:$0xf]
      %v168 = vld [vmem:[%s139 + $0x50] sm:$0xf]
      %v169 = vld [vmem:[%s139 + $0x54] sm:$0xf]
      %v170 = vld [vmem:[%s139 + $0x58] sm:$0xf]
      %v171 = vld [vmem:[%s139 + $0x5c] sm:$0xf]
      %v172 = vld [vmem:[%s139 + $0x60] sm:$0xf]
      %v173 = vld [vmem:[%s139 + $0x64] sm:$0xf]
      %v174 = vld [vmem:[%s139 + $0x68] sm:$0xf]
      %v175 = vld [vmem:[%s139 + $0x6c] sm:$0xf]
      %v176 = vld [vmem:[%s139 + $0x70] sm:$0xf]
      %v177 = vld [vmem:[%s139 + $0x74] sm:$0xf]
      %v178 = vld [vmem:[%s139 + $0x78] sm:$0xf]
      %v179 = vld [vmem:[%s139 + $0x7c] sm:$0xf]
      %v180 = vld [vmem:[%s139 + $0x80] sm:$0xf]
      %v181 = vld [vmem:[%s139 + $0x84] sm:$0xf]
      %v182 = vld [vmem:[%s139 + $0x88] sm:$0xf]
      %v183 = vld [vmem:[%s139 + $0x8c] sm:$0xf]
      %v184 = vld [vmem:[%s139 + $0x90] sm:$0xf]
      %v185 = vld [vmem:[%s139 + $0x94] sm:$0xf]
      %v186 = vld [vmem:[%s139 + $0x98] sm:$0xf]
      %v187 = vld [vmem:[%s139 + $0x9c] sm:$0xf]
      %v188 = vld [vmem:[%s139 + $0xa0] sm:$0xf]
      %v189 = vld [vmem:[%s139 + $0xa4] sm:$0xf]
      %v190 = vld [vmem:[%s139 + $0xa8] sm:$0xf]
      %v191 = vld [vmem:[%s139 + $0xac] sm:$0xf]
      %v192 = vld [vmem:[%s139 + $0xb0] sm:$0xf]
      %v193 = vld [vmem:[%s139 + $0xb4] sm:$0xf]
      %v194 = vld [vmem:[%s139 + $0xb8] sm:$0xf]
      %v195 = vld [vmem:[%s139 + $0xbc] sm:$0xf]
      %v196 = vld [vmem:[%s139 + $0xc0] sm:$0xf]
      %v197 = vld [vmem:[%s139 + $0xc4] sm:$0xf]
      %v198 = vld [vmem:[%s139 + $0xc8] sm:$0xf]
      %v199 = vld [vmem:[%s139 + $0xcc] sm:$0xf]
      %v200 = vld [vmem:[%s139 + $0xd0] sm:$0xf]
      %v201 = vld [vmem:[%s139 + $0xd4] sm:$0xf]
      %v202 = vld [vmem:[%s139 + $0xd8] sm:$0xf]
      %v203 = vld [vmem:[%s139 + $0xdc] sm:$0xf]
      %v204 = vld [vmem:[%s139 + $0xe0] sm:$0xf]
      %v205 = vld [vmem:[%s139 + $0xe4] sm:$0xf]
      %v206 = vld [vmem:[%s139 + $0xe8] sm:$0xf]
      %v207 = vld [vmem:[%s139 + $0xec] sm:$0xf]
      %v208 = vld [vmem:[%s139 + $0xf0] sm:$0xf]
      %v209 = vld [vmem:[%s139 + $0xf4] sm:$0xf]
      %v210 = vld [vmem:[%s139 + $0xf8] sm:$0xf]
      %v211 = vld [vmem:[%s139 + $0xfc] sm:$0xf]
      %v212 = vld [vmem:[%s139 + $0x100] sm:$0xf]
      %v213 = vld [vmem:[%s139 + $0x104] sm:$0xf]
      %v214 = vld [vmem:[%s139 + $0x108] sm:$0xf]
      %v215 = vld [vmem:[%s139 + $0x10c] sm:$0xf]
      %v216 = vld [vmem:[%s139 + $0x110] sm:$0xf]
      %v217 = vld [vmem:[%s139 + $0x114] sm:$0xf]
      %v218 = vld [vmem:[%s139 + $0x118] sm:$0xf]
      %v219 = vld [vmem:[%s139 + $0x11c] sm:$0xf]
      %v220 = vld [vmem:[%s139 + $0x120] sm:$0xf]
      %v221 = vld [vmem:[%s139 + $0x124] sm:$0xf]
      %v222 = vld [vmem:[%s139 + $0x128] sm:$0xf]
      %v223 = vld [vmem:[%s139 + $0x12c] sm:$0xf]
      %v224 = vld [vmem:[%s139 + $0x130] sm:$0xf]
      %v225 = vld [vmem:[%s139 + $0x134] sm:$0xf]
      %v226 = vld [vmem:[%s139 + $0x138] sm:$0xf]
      %v227 = vld [vmem:[%s139 + $0x13c] sm:$0xf]
      %v228 = vld [vmem:[%s139 + $0x140] sm:$0xf]
      %v229 = vld [vmem:[%s139 + $0x144] sm:$0xf]
      %v230 = vld [vmem:[%s139 + $0x148] sm:$0xf]
      %v231 = vld [vmem:[%s139 + $0x14c] sm:$0xf]
      %v232 = vld [vmem:[%s139 + $0x150] sm:$0xf]
      %v233 = vld [vmem:[%s139 + $0x154] sm:$0xf]
      %v234 = vld [vmem:[%s139 + $0x158] sm:$0xf]
      %v235 = vld [vmem:[%s139 + $0x15c] sm:$0xf]
      %v236 = vld [vmem:[%s139 + $0x160] sm:$0xf]
      %v237 = vld [vmem:[%s139 + $0x164] sm:$0xf]
      %v238 = vld [vmem:[%s139 + $0x168] sm:$0xf]
      %v239 = vld [vmem:[%s139 + $0x16c] sm:$0xf]
      %v240 = vld [vmem:[%s139 + $0x170] sm:$0xf]
      %v241 = vld [vmem:[%s139 + $0x174] sm:$0xf]
      %v242 = vld [vmem:[%s139 + $0x178] sm:$0xf]
      %v243 = vld [vmem:[%s139 + $0x17c] sm:$0xf]
      %v244 = vld [vmem:[%s139 + $0x180] sm:$0xf]
      %v245 = vld [vmem:[%s139 + $0x184] sm:$0xf]
      %v246 = vld [vmem:[%s139 + $0x188] sm:$0xf]
      %v247 = vld [vmem:[%s139 + $0x18c] sm:$0xf]
      %v248 = vld [vmem:[%s139 + $0x190] sm:$0xf]
      %v249 = vld [vmem:[%s139 + $0x194] sm:$0xf]
      %v250 = vld [vmem:[%s139 + $0x198] sm:$0xf]
      %v251 = vld [vmem:[%s139 + $0x19c] sm:$0xf]
      %v252 = vld [vmem:[%s139 + $0x1a0] sm:$0xf]
      %v253 = vld [vmem:[%s139 + $0x1a4] sm:$0xf]
      %v254 = vld [vmem:[%s139 + $0x1a8] sm:$0xf]
      %v255 = vld [vmem:[%s139 + $0x1ac] sm:$0xf]
      %v256 = vld [vmem:[%s139 + $0x1b0] sm:$0xf]
      %v257 = vld [vmem:[%s139 + $0x1b4] sm:$0xf]
      %v258 = vld [vmem:[%s139 + $0x1b8] sm:$0xf]
      %v259 = vld [vmem:[%s139 + $0x1bc] sm:$0xf]
      %v260 = vld [vmem:[%s139 + $0x1c0] sm:$0xf]
      %v261 = vld [vmem:[%s139 + $0x1c4] sm:$0xf]
      %v262 = vld [vmem:[%s139 + $0x1c8] sm:$0xf]
      %v263 = vld [vmem:[%s139 + $0x1cc] sm:$0xf]
      %v264 = vld [vmem:[%s139 + $0x1d0] sm:$0xf]
      %v265 = vld [vmem:[%s139 + $0x1d4] sm:$0xf]
      %v266 = vld [vmem:[%s139 + $0x1d8] sm:$0xf]
      %v267 = vld [vmem:[%s139 + $0x1dc] sm:$0xf]
      %v268 = vld [vmem:[%s139 + $0x1e0] sm:$0xf]
      %v269 = vld [vmem:[%s139 + $0x1e4] sm:$0xf]
      %v270 = vld [vmem:[%s139 + $0x1e8] sm:$0xf]
      %v271 = vld [vmem:[%s139 + $0x1ec] sm:$0xf]
      %v272 = vld [vmem:[%s139 + $0x1f0] sm:$0xf]
      %v273 = vld [vmem:[%s139 + $0x1f4] sm:$0xf]
      %v274 = vld [vmem:[%s139 + $0x1f8] sm:$0xf]
      %v275 = vld [vmem:[%s139 + $0x1fc] sm:$0xf]
      %v276 = vld [vmem:[%s1] sm:$0xf]
      %v277 = vld [vmem:[%s1 + $0x4] sm:$0xf]
      %v278 = vld [vmem:[%s1 + $0x8] sm:$0xf]
      %v279 = vld [vmem:[%s1 + $0xc] sm:$0xf]
      %v280 = vld [vmem:[%s1 + $0x40] sm:$0xf]
      %v281 = vld [vmem:[%s1 + $0x44] sm:$0xf]
      %v282 = vld [vmem:[%s1 + $0x48] sm:$0xf]
      %v283 = vld [vmem:[%s1 + $0x4c] sm:$0xf]
      %v284 = vld [vmem:[%s1 + $0x50] sm:$0xf]
      %v285 = vld [vmem:[%s1 + $0x54] sm:$0xf]
      %v286 = vld [vmem:[%s1 + $0x58] sm:$0xf]
      %v287 = vld [vmem:[%s1 + $0x5c] sm:$0xf]
      %v288 = vld [vmem:[%s1 + $0x60] sm:$0xf]
      %v289 = vld [vmem:[%s1 + $0x64] sm:$0xf]
      %v290 = vld [vmem:[%s1 + $0x68] sm:$0xf]
      %v291 = vld [vmem:[%s1 + $0x6c] sm:$0xf]
      %v292 = vld [vmem:[%s1 + $0x70] sm:$0xf]
      %v293 = vld [vmem:[%s1 + $0x74] sm:$0xf]
      %v294 = vld [vmem:[%s1 + $0x78] sm:$0xf]
      %v295 = vld [vmem:[%s1 + $0x7c] sm:$0xf]
      %v296 = vld [vmem:[%s1 + $0x80] sm:$0xf]
      %v297 = vld [vmem:[%s1 + $0x84] sm:$0xf]
      %v298 = vld [vmem:[%s1 + $0x88] sm:$0xf]
      %v299 = vld [vmem:[%s1 + $0x8c] sm:$0xf]
      %v300 = vld [vmem:[%s1 + $0x90] sm:$0xf]
      %v301 = vld [vmem:[%s1 + $0x94] sm:$0xf]
      %v302 = vld [vmem:[%s1 + $0x98] sm:$0xf]
      %v303 = vld [vmem:[%s1 + $0x9c] sm:$0xf]
      %v304 = vld [vmem:[%s1 + $0xa0] sm:$0xf]
      %v305 = vld [vmem:[%s1 + $0xa4] sm:$0xf]
      %v306 = vld [vmem:[%s1 + $0xa8] sm:$0xf]
      %v307 = vld [vmem:[%s1 + $0xac] sm:$0xf]
      %v308 = vld [vmem:[%s1 + $0xb0] sm:$0xf]
      %v309 = vld [vmem:[%s1 + $0xb4] sm:$0xf]
      %v310 = vld [vmem:[%s1 + $0xb8] sm:$0xf]
      %v311 = vld [vmem:[%s1 + $0xbc] sm:$0xf]
      %v312 = vld [vmem:[%s1 + $0xc0] sm:$0x1]
      %v313 = vld [vmem:[%s1 + $0xc4] sm:$0x1]
      %v314 = vld [vmem:[%s1 + $0xc8] sm:$0x1]
      %v315 = vunpack.c.l.bf16 %v312
      %v316 = vlaneseq
      %v317 = vshrl.u32 %v316, 7
      %v318 = vsub.s32 0, %v317
      %v319 = vrot.slane %v315, %v318
      %v448 = vunpack.c.l.b16 %v148
      %v449 = vunpack.c.l.b16 %v149
      %v450 = vunpack.c.l.b16 %v150
      %v451 = vunpack.c.l.b16 %v151
      %v452 = vunpack.c.l.b16 %v152
      %v453 = vunpack.c.l.b16 %v153
      %v454 = vunpack.c.l.b16 %v154
      %v455 = vunpack.c.l.b16 %v155
      %v456 = vunpack.c.l.b16 %v156
      %v457 = vunpack.c.l.b16 %v157
      %v458 = vunpack.c.l.b16 %v158
      %v459 = vunpack.c.l.b16 %v159
      %v460 = vunpack.c.l.b16 %v160
      %v461 = vunpack.c.l.b16 %v161
      %v462 = vunpack.c.l.b16 %v162
      %v463 = vunpack.c.l.b16 %v163
      %v464 = vunpack.c.l.b16 %v164
      %v465 = vunpack.c.l.b16 %v165
      %v466 = vunpack.c.l.b16 %v166
      %v467 = vunpack.c.l.b16 %v167
      %v468 = vunpack.c.l.b16 %v168
      %v469 = vunpack.c.l.b16 %v169
      %v470 = vunpack.c.l.b16 %v170
      %v471 = vunpack.c.l.b16 %v171
      %v472 = vunpack.c.l.b16 %v172
      %v473 = vunpack.c.l.b16 %v173
      %v474 = vunpack.c.l.b16 %v174
      %v475 = vunpack.c.l.b16 %v175
      %v476 = vunpack.c.l.b16 %v176
      %v477 = vunpack.c.l.b16 %v177
      %v478 = vunpack.c.l.b16 %v178
      %v479 = vunpack.c.l.b16 %v179
      %v480 = vunpack.c.l.b16 %v180
      %v481 = vunpack.c.l.b16 %v181
      %v482 = vunpack.c.l.b16 %v182
      %v483 = vunpack.c.l.b16 %v183
      %v484 = vunpack.c.l.b16 %v184
      %v485 = vunpack.c.l.b16 %v185
      %v486 = vunpack.c.l.b16 %v186
      %v487 = vunpack.c.l.b16 %v187
      %v488 = vunpack.c.l.b16 %v188
      %v489 = vunpack.c.l.b16 %v189
      %v490 = vunpack.c.l.b16 %v190
      %v491 = vunpack.c.l.b16 %v191
      %v492 = vunpack.c.l.b16 %v192
      %v493 = vunpack.c.l.b16 %v193
      %v494 = vunpack.c.l.b16 %v194
      %v495 = vunpack.c.l.b16 %v195
      %v496 = vunpack.c.l.b16 %v196
      %v497 = vunpack.c.l.b16 %v197
      %v498 = vunpack.c.l.b16 %v198
      %v499 = vunpack.c.l.b16 %v199
      %v500 = vunpack.c.l.b16 %v200
      %v501 = vunpack.c.l.b16 %v201
      %v502 = vunpack.c.l.b16 %v202
      %v503 = vunpack.c.l.b16 %v203
      %v504 = vunpack.c.l.b16 %v204
      %v505 = vunpack.c.l.b16 %v205
      %v506 = vunpack.c.l.b16 %v206
      %v507 = vunpack.c.l.b16 %v207
      %v508 = vunpack.c.l.b16 %v208
      %v509 = vunpack.c.l.b16 %v209
      %v510 = vunpack.c.l.b16 %v210
      %v511 = vunpack.c.l.b16 %v211
      %v512 = vunpack.c.l.b16 %v212
      %v513 = vunpack.c.l.b16 %v213
      %v514 = vunpack.c.l.b16 %v214
      %v515 = vunpack.c.l.b16 %v215
      %v516 = vunpack.c.l.b16 %v216
      %v517 = vunpack.c.l.b16 %v217
      %v518 = vunpack.c.l.b16 %v218
      %v519 = vunpack.c.l.b16 %v219
      %v520 = vunpack.c.l.b16 %v220
      %v521 = vunpack.c.l.b16 %v221
      %v522 = vunpack.c.l.b16 %v222
      %v523 = vunpack.c.l.b16 %v223
      %v524 = vunpack.c.l.b16 %v224
      %v525 = vunpack.c.l.b16 %v225
      %v526 = vunpack.c.l.b16 %v226
      %v527 = vunpack.c.l.b16 %v227
      %v528 = vunpack.c.l.b16 %v228
      %v529 = vunpack.c.l.b16 %v229
      %v530 = vunpack.c.l.b16 %v230
      %v531 = vunpack.c.l.b16 %v231
      %v532 = vunpack.c.l.b16 %v232
      %v533 = vunpack.c.l.b16 %v233
      %v534 = vunpack.c.l.b16 %v234
      %v535 = vunpack.c.l.b16 %v235
      %v536 = vunpack.c.l.b16 %v236
      %v537 = vunpack.c.l.b16 %v237
      %v538 = vunpack.c.l.b16 %v238
      %v539 = vunpack.c.l.b16 %v239
      %v540 = vunpack.c.l.b16 %v240
      %v541 = vunpack.c.l.b16 %v241
      %v542 = vunpack.c.l.b16 %v242
      %v543 = vunpack.c.l.b16 %v243
      %v544 = vunpack.c.l.b16 %v244
      %v545 = vunpack.c.l.b16 %v245
      %v546 = vunpack.c.l.b16 %v246
      %v547 = vunpack.c.l.b16 %v247
      %v548 = vunpack.c.l.b16 %v248
      %v549 = vunpack.c.l.b16 %v249
      %v550 = vunpack.c.l.b16 %v250
      %v551 = vunpack.c.l.b16 %v251
      %v552 = vunpack.c.l.b16 %v252
      %v553 = vunpack.c.l.b16 %v253
      %v554 = vunpack.c.l.b16 %v254
      %v555 = vunpack.c.l.b16 %v255
      %v556 = vunpack.c.l.b16 %v256
      %v557 = vunpack.c.l.b16 %v257
      %v558 = vunpack.c.l.b16 %v258
      %v559 = vunpack.c.l.b16 %v259
      %v560 = vunpack.c.l.b16 %v260
      %v561 = vunpack.c.l.b16 %v261
      %v562 = vunpack.c.l.b16 %v262
      %v563 = vunpack.c.l.b16 %v263
      %v564 = vunpack.c.l.b16 %v264
      %v565 = vunpack.c.l.b16 %v265
      %v566 = vunpack.c.l.b16 %v266
      %v567 = vunpack.c.l.b16 %v267
      %v568 = vunpack.c.l.b16 %v268
      %v569 = vunpack.c.l.b16 %v269
      %v570 = vunpack.c.l.b16 %v270
      %v571 = vunpack.c.l.b16 %v271
      %v572 = vunpack.c.l.b16 %v272
      %v573 = vunpack.c.l.b16 %v273
      %v574 = vunpack.c.l.b16 %v274
      %v575 = vunpack.c.l.b16 %v275
      %v576 = vpack.c.b16 %v449, %v448
      %v577 = vpack.c.b16 %v451, %v450
      %v578 = vpack.c.b16 %v453, %v452
      %v579 = vpack.c.b16 %v455, %v454
      %v580 = vpack.c.b16 %v457, %v456
      %v581 = vpack.c.b16 %v459, %v458
      %v582 = vpack.c.b16 %v461, %v460
      %v583 = vpack.c.b16 %v463, %v462
      %v584 = vpack.c.b16 %v465, %v464
      %v585 = vpack.c.b16 %v467, %v466
      %v586 = vpack.c.b16 %v469, %v468
      %v587 = vpack.c.b16 %v471, %v470
      %v588 = vpack.c.b16 %v473, %v472
      %v589 = vpack.c.b16 %v475, %v474
      %v590 = vpack.c.b16 %v477, %v476
      %v591 = vpack.c.b16 %v479, %v478
      %v592 = vpack.c.b16 %v481, %v480
      %v593 = vpack.c.b16 %v483, %v482
      %v594 = vpack.c.b16 %v485, %v484
      %v595 = vpack.c.b16 %v487, %v486
      %v596 = vpack.c.b16 %v489, %v488
      %v597 = vpack.c.b16 %v491, %v490
      %v598 = vpack.c.b16 %v493, %v492
      %v599 = vpack.c.b16 %v495, %v494
      %v600 = vpack.c.b16 %v497, %v496
      %v601 = vpack.c.b16 %v499, %v498
      %v602 = vpack.c.b16 %v501, %v500
      %v603 = vpack.c.b16 %v503, %v502
      %v604 = vpack.c.b16 %v505, %v504
      %v605 = vpack.c.b16 %v507, %v506
      %v606 = vpack.c.b16 %v509, %v508
      %v607 = vpack.c.b16 %v511, %v510
      %v608 = vpack.c.b16 %v513, %v512
      %v609 = vpack.c.b16 %v515, %v514
      %v610 = vpack.c.b16 %v517, %v516
      %v611 = vpack.c.b16 %v519, %v518
      %v612 = vpack.c.b16 %v521, %v520
      %v613 = vpack.c.b16 %v523, %v522
      %v614 = vpack.c.b16 %v525, %v524
      %v615 = vpack.c.b16 %v527, %v526
      %v616 = vpack.c.b16 %v529, %v528
      %v617 = vpack.c.b16 %v531, %v530
      %v618 = vpack.c.b16 %v533, %v532
      %v619 = vpack.c.b16 %v535, %v534
      %v620 = vpack.c.b16 %v537, %v536
      %v621 = vpack.c.b16 %v539, %v538
      %v622 = vpack.c.b16 %v541, %v540
      %v623 = vpack.c.b16 %v543, %v542
      %v624 = vpack.c.b16 %v545, %v544
      %v625 = vpack.c.b16 %v547, %v546
      %v626 = vpack.c.b16 %v549, %v548
      %v627 = vpack.c.b16 %v551, %v550
      %v628 = vpack.c.b16 %v553, %v552
      %v629 = vpack.c.b16 %v555, %v554
      %v630 = vpack.c.b16 %v557, %v556
      %v631 = vpack.c.b16 %v559, %v558
      %v632 = vpack.c.b16 %v561, %v560
      %v633 = vpack.c.b16 %v563, %v562
      %v634 = vpack.c.b16 %v565, %v564
      %v635 = vpack.c.b16 %v567, %v566
      %v636 = vpack.c.b16 %v569, %v568
      %v637 = vpack.c.b16 %v571, %v570
      %v638 = vpack.c.b16 %v573, %v572
      %v639 = vpack.c.b16 %v575, %v574
      %v644 = vunpack.c.l.b16 %v276
      %v645 = vunpack.c.l.b16 %v277
      %v646 = vunpack.c.l.b16 %v278
      %v647 = vunpack.c.l.b16 %v279
      %v648 = vpack.c.b16 %v645, %v644
      %v649 = vpack.c.b16 %v647, %v646
      %vm652 = vcmask 261120
      %v654 = vsel %vm652, %v576, 0
      %v657 = vsel %vm652, %v577, 0
      %v660 = vsel %vm652, %v578, 0
      %v663 = vsel %vm652, %v579, 0
      %v666 = vsel %vm652, %v580, 0
      %v669 = vsel %vm652, %v581, 0
      %v672 = vsel %vm652, %v582, 0
      %v675 = vsel %vm652, %v583, 0
      %v678 = vsel %vm652, %v584, 0
      %v681 = vsel %vm652, %v585, 0
      %v684 = vsel %vm652, %v586, 0
      %v687 = vsel %vm652, %v587, 0
      %v690 = vsel %vm652, %v588, 0
      %v693 = vsel %vm652, %v589, 0
      %v696 = vsel %vm652, %v590, 0
      %v699 = vsel %vm652, %v591, 0
      %v702 = vsel %vm652, %v592, 0
      %v705 = vsel %vm652, %v593, 0
      %v708 = vsel %vm652, %v594, 0
      %v711 = vsel %vm652, %v595, 0
      %v714 = vsel %vm652, %v596, 0
      %v717 = vsel %vm652, %v597, 0
      %v720 = vsel %vm652, %v598, 0
      %v723 = vsel %vm652, %v599, 0
      %v726 = vsel %vm652, %v600, 0
      %v729 = vsel %vm652, %v601, 0
      %v732 = vsel %vm652, %v602, 0
      %v735 = vsel %vm652, %v603, 0
      %v738 = vsel %vm652, %v604, 0
      %v741 = vsel %vm652, %v605, 0
      %v744 = vsel %vm652, %v606, 0
      %v747 = vsel %vm652, %v607, 0
      %v750 = vsel %vm652, %v608, 0
      %v753 = vsel %vm652, %v609, 0
      %v756 = vsel %vm652, %v610, 0
      %v759 = vsel %vm652, %v611, 0
      %v762 = vsel %vm652, %v612, 0
      %v765 = vsel %vm652, %v613, 0
      %v768 = vsel %vm652, %v614, 0
      %v771 = vsel %vm652, %v615, 0
      %v774 = vsel %vm652, %v616, 0
      %v777 = vsel %vm652, %v617, 0
      %v780 = vsel %vm652, %v618, 0
      %v783 = vsel %vm652, %v619, 0
      %v786 = vsel %vm652, %v620, 0
      %v789 = vsel %vm652, %v621, 0
      %v792 = vsel %vm652, %v622, 0
      %v795 = vsel %vm652, %v623, 0
      %v798 = vsel %vm652, %v624, 0
      %v801 = vsel %vm652, %v625, 0
      %v804 = vsel %vm652, %v626, 0
      %v807 = vsel %vm652, %v627, 0
      %v810 = vsel %vm652, %v628, 0
      %v813 = vsel %vm652, %v629, 0
      %v816 = vsel %vm652, %v630, 0
      %v819 = vsel %vm652, %v631, 0
      %v822 = vsel %vm652, %v632, 0
      %v825 = vsel %vm652, %v633, 0
      %v828 = vsel %vm652, %v634, 0
      %v831 = vsel %vm652, %v635, 0
      %v834 = vsel %vm652, %v636, 0
      %v837 = vsel %vm652, %v637, 0
      %v840 = vsel %vm652, %v638, 0
      %v843 = vsel %vm652, %v639, 0
      %845 = vmatprep.subr.bf16.mxu0 0
      %846 = vmatpush1.bf16.msra.mxu0 %v648
      %847 = vmatprep.subr.bf16.mxu0 0
      %848 = vmatpush1.bf16.msra.mxu0 %v649
      %849 = vmatprep.subr.bf16.mxu0 0
      %850 = vmatpush1.bf16.msra.mxu0 0
      %851 = vmatprep.subr.bf16.mxu0 0
      %852 = vmatpush1.bf16.msra.mxu0 0
      %853 = vmatprep.subr.bf16.mxu0 0
      %854 = vmatpush1.bf16.msra.mxu0 0
      %855 = vmatprep.subr.bf16.mxu0 0
      %856 = vmatpush1.bf16.msra.mxu0 0
      %857 = vmatprep.subr.bf16.mxu0 0
      %858 = vmatpush1.bf16.msra.mxu0 0
      %859 = vmatprep.subr.bf16.mxu0 0
      %860 = vmatpush1.bf16.msra.mxu0 0
      %861 = vmatprep.subr.bf16.mxu0 0
      %862 = vmatpush1.bf16.msra.mxu0 0
      %863 = vmatprep.subr.bf16.mxu0 0
      %864 = vmatpush1.bf16.msra.mxu0 0
      %865 = vmatprep.subr.bf16.mxu0 0
      %866 = vmatpush1.bf16.msra.mxu0 0
      %867 = vmatprep.subr.bf16.mxu0 0
      %868 = vmatpush1.bf16.msra.mxu0 0
      %869 = vmatprep.subr.bf16.mxu0 0
      %870 = vmatpush1.bf16.msra.mxu0 0
      %871 = vmatprep.subr.bf16.mxu0 0
      %872 = vmatpush1.bf16.msra.mxu0 0
      %873 = vmatprep.subr.bf16.mxu0 0
      %874 = vmatpush1.bf16.msra.mxu0 0
      %875 = vmatprep.subr.bf16.mxu0 0
      %876 = vmatpush1.bf16.msra.mxu0 0
      %877 = vmatprep.mubr.bf16.mxu0 0
      %878 = vmatmul.mubr.bf16.gmra.mrb[0].mxu0 %v654
      %v879 = vpop.f32.mrb[0].mxu0
      %v880 = vadd.f32 %v319, %v879
      %v881 = vpop.f32.mrb[0].mxu0
      %v882 = vpop.f32.mrb[0].mxu0
      %v883 = vadd.f32 %v319, %v882
      %v884 = vpop.f32.mrb[0].mxu0
      %885 = vmatprep.mubr.bf16.mxu0 0
      %886 = vmatmul.mubr.bf16.gmra.mrb[0].mxu0 %v657
      %v887 = vpop.f32.mrb[0].mxu0
      %v888 = vadd.f32 %v319, %v887
      %v889 = vpop.f32.mrb[0].mxu0
      %v890 = vpop.f32.mrb[0].mxu0
      %v891 = vadd.f32 %v319, %v890
      %v892 = vpop.f32.mrb[0].mxu0
      %893 = vmatprep.mubr.bf16.mxu0 0
      %894 = vmatmul.mubr.bf16.gmra.mrb[0].mxu0 %v660
      %v895 = vpop.f32.mrb[0].mxu0
      %v896 = vadd.f32 %v319, %v895
      %v897 = vpop.f32.mrb[0].mxu0
      %v898 = vpop.f32.mrb[0].mxu0
      %v899 = vadd.f32 %v319, %v898
      %v900 = vpop.f32.mrb[0].mxu0
      %901 = vmatprep.mubr.bf16.mxu0 0
      %902 = vmatmul.mubr.bf16.gmra.mrb[0].mxu0 %v663
      %v903 = vpop.f32.mrb[0].mxu0
      %v904 = vadd.f32 %v319, %v903
      %v905 = vpop.f32.mrb[0].mxu0
      %v906 = vpop.f32.mrb[0].mxu0
      %v907 = vadd.f32 %v319, %v906
      %v908 = vpop.f32.mrb[0].mxu0
      %909 = vmatprep.mubr.bf16.mxu0 0
      %910 = vmatmul.mubr.bf16.gmra.mrb[0].mxu0 %v666
      %v911 = vpop.f32.mrb[0].mxu0
      %v912 = vadd.f32 %v319, %v911
      %v913 = vpop.f32.mrb[0].mxu0
      %v914 = vpop.f32.mrb[0].mxu0
      %v915 = vadd.f32 %v319, %v914
      %v916 = vpop.f32.mrb[0].mxu0
      %917 = vmatprep.mubr.bf16.mxu0 0
      %918 = vmatmul.mubr.bf16.gmra.mrb[0].mxu0 %v669
      %v919 = vpop.f32.mrb[0].mxu0
      %v920 = vadd.f32 %v319, %v919
      %v921 = vpop.f32.mrb[0].mxu0
      %v922 = vpop.f32.mrb[0].mxu0
      %v923 = vadd.f32 %v319, %v922
      %v924 = vpop.f32.mrb[0].mxu0
      %925 = vmatprep.mubr.bf16.mxu0 0
      %926 = vmatmul.mubr.bf16.gmra.mrb[0].mxu0 %v672
      %v927 = vpop.f32.mrb[0].mxu0
      %v928 = vadd.f32 %v319, %v927
      %v929 = vpop.f32.mrb[0].mxu0
      %v930 = vpop.f32.mrb[0].mxu0
      %v931 = vadd.f32 %v319, %v930
      %v932 = vpop.f32.mrb[0].mxu0
      %933 = vmatprep.mubr.bf16.mxu0 0
      %934 = vmatmul.mubr.bf16.gmra.mrb[0].mxu0 %v675
      %v935 = vpop.f32.mrb[0].mxu0
      %v936 = vadd.f32 %v319, %v935
      %v937 = vpop.f32.mrb[0].mxu0
      %v938 = vpop.f32.mrb[0].mxu0
      %v939 = vadd.f32 %v319, %v938
      %v940 = vpop.f32.mrb[0].mxu0
      %941 = vmatprep.mubr.bf16.mxu0 0
      %942 = vmatmul.mubr.bf16.gmra.mrb[0].mxu0 %v678
      %v943 = vpop.f32.mrb[0].mxu0
      %v944 = vadd.f32 %v319, %v943
      %v945 = vpop.f32.mrb[0].mxu0
      %v946 = vpop.f32.mrb[0].mxu0
      %v947 = vadd.f32 %v319, %v946
      %v948 = vpop.f32.mrb[0].mxu0
      %949 = vmatprep.mubr.bf16.mxu0 0
      %950 = vmatmul.mubr.bf16.gmra.mrb[0].mxu0 %v681
      %v951 = vpop.f32.mrb[0].mxu0
      %v952 = vadd.f32 %v319, %v951
      %v953 = vpop.f32.mrb[0].mxu0
      %v954 = vpop.f32.mrb[0].mxu0
      %v955 = vadd.f32 %v319, %v954
      %v956 = vpop.f32.mrb[0].mxu0
      %957 = vmatprep.mubr.bf16.mxu0 0
      %958 = vmatmul.mubr.bf16.gmra.mrb[0].mxu0 %v684
      %v959 = vpop.f32.mrb[0].mxu0
      %v960 = vadd.f32 %v319, %v959
      %v961 = vpop.f32.mrb[0].mxu0
      %v962 = vpop.f32.mrb[0].mxu0
      %v963 = vadd.f32 %v319, %v962
      %v964 = vpop.f32.mrb[0].mxu0
      %965 = vmatprep.mubr.bf16.mxu0 0
      %966 = vmatmul.mubr.bf16.gmra.mrb[0].mxu0 %v687
      %v967 = vpop.f32.mrb[0].mxu0
      %v968 = vadd.f32 %v319, %v967
      %v969 = vpop.f32.mrb[0].mxu0
      %v970 = vpop.f32.mrb[0].mxu0
      %v971 = vadd.f32 %v319, %v970
      %v972 = vpop.f32.mrb[0].mxu0
      %973 = vmatprep.mubr.bf16.mxu0 0
      %974 = vmatmul.mubr.bf16.gmra.mrb[0].mxu0 %v690
      %v975 = vpop.f32.mrb[0].mxu0
      %v976 = vadd.f32 %v319, %v975
      %v977 = vpop.f32.mrb[0].mxu0
      %v978 = vpop.f32.mrb[0].mxu0
      %v979 = vadd.f32 %v319, %v978
      %v980 = vpop.f32.mrb[0].mxu0
      %981 = vmatprep.mubr.bf16.mxu0 0
      %982 = vmatmul.mubr.bf16.gmra.mrb[0].mxu0 %v693
      %v983 = vpop.f32.mrb[0].mxu0
      %v984 = vadd.f32 %v319, %v983
      %v985 = vpop.f32.mrb[0].mxu0
      %v986 = vpop.f32.mrb[0].mxu0
      %v987 = vadd.f32 %v319, %v986
      %v988 = vpop.f32.mrb[0].mxu0
      %989 = vmatprep.mubr.bf16.mxu0 0
      %990 = vmatmul.mubr.bf16.gmra.mrb[0].mxu0 %v696
      %v991 = vpop.f32.mrb[0].mxu0
      %v992 = vadd.f32 %v319, %v991
      %v993 = vpop.f32.mrb[0].mxu0
      %v994 = vpop.f32.mrb[0].mxu0
      %v995 = vadd.f32 %v319, %v994
      %v996 = vpop.f32.mrb[0].mxu0
      %997 = vmatprep.mubr.bf16.mxu0 0
      %998 = vmatmul.mubr.bf16.gmra.mrb[0].mxu0 %v699
      %v999 = vpop.f32.mrb[0].mxu0
      %v1000 = vadd.f32 %v319, %v999
      %v1001 = vpop.f32.mrb[0].mxu0
      %v1002 = vpop.f32.mrb[0].mxu0
      %v1003 = vadd.f32 %v319, %v1002
      %v1004 = vpop.f32.mrb[0].mxu0
      %1005 = vmatprep.mubr.bf16.mxu0 0
      %1006 = vmatmul.mubr.bf16.gmra.mrb[0].mxu0 %v702
      %v1007 = vpop.f32.mrb[0].mxu0
      %v1008 = vadd.f32 %v319, %v1007
      %v1009 = vpop.f32.mrb[0].mxu0
      %v1010 = vpop.f32.mrb[0].mxu0
      %v1011 = vadd.f32 %v319, %v1010
      %v1012 = vpop.f32.mrb[0].mxu0
      %1013 = vmatprep.mubr.bf16.mxu0 0
      %1014 = vmatmul.mubr.bf16.gmra.mrb[0].mxu0 %v705
      %v1015 = vpop.f32.mrb[0].mxu0
      %v1016 = vadd.f32 %v319, %v1015
      %v1017 = vpop.f32.mrb[0].mxu0
      %v1018 = vpop.f32.mrb[0].mxu0
      %v1019 = vadd.f32 %v319, %v1018
      %v1020 = vpop.f32.mrb[0].mxu0
      %1021 = vmatprep.mubr.bf16.mxu0 0
      %1022 = vmatmul.mubr.bf16.gmra.mrb[0].mxu0 %v708
      %v1023 = vpop.f32.mrb[0].mxu0
      %v1024 = vadd.f32 %v319, %v1023
      %v1025 = vpop.f32.mrb[0].mxu0
      %v1026 = vpop.f32.mrb[0].mxu0
      %v1027 = vadd.f32 %v319, %v1026
      %v1028 = vpop.f32.mrb[0].mxu0
      %1029 = vmatprep.mubr.bf16.mxu0 0
      %1030 = vmatmul.mubr.bf16.gmra.mrb[0].mxu0 %v711
      %v1031 = vpop.f32.mrb[0].mxu0
      %v1032 = vadd.f32 %v319, %v1031
      %v1033 = vpop.f32.mrb[0].mxu0
      %v1034 = vpop.f32.mrb[0].mxu0
      %v1035 = vadd.f32 %v319, %v1034
      %v1036 = vpop.f32.mrb[0].mxu0
      %1037 = vmatprep.mubr.bf16.mxu0 0
      %1038 = vmatmul.mubr.bf16.gmra.mrb[0].mxu0 %v714
      %v1039 = vpop.f32.mrb[0].mxu0
      %v1040 = vadd.f32 %v319, %v1039
      %v1041 = vpop.f32.mrb[0].mxu0
      %v1042 = vpop.f32.mrb[0].mxu0
      %v1043 = vadd.f32 %v319, %v1042
      %v1044 = vpop.f32.mrb[0].mxu0
      %1045 = vmatprep.mubr.bf16.mxu0 0
      %1046 = vmatmul.mubr.bf16.gmra.mrb[0].mxu0 %v717
      %v1047 = vpop.f32.mrb[0].mxu0
      %v1048 = vadd.f32 %v319, %v1047
      %v1049 = vpop.f32.mrb[0].mxu0
      %v1050 = vpop.f32.mrb[0].mxu0
      %v1051 = vadd.f32 %v319, %v1050
      %v1052 = vpop.f32.mrb[0].mxu0
      %1053 = vmatprep.mubr.bf16.mxu0 0
      %1054 = vmatmul.mubr.bf16.gmra.mrb[0].mxu0 %v720
      %v1055 = vpop.f32.mrb[0].mxu0
      %v1056 = vadd.f32 %v319, %v1055
      %v1057 = vpop.f32.mrb[0].mxu0
      %v1058 = vpop.f32.mrb[0].mxu0
      %v1059 = vadd.f32 %v319, %v1058
      %v1060 = vpop.f32.mrb[0].mxu0
      %1061 = vmatprep.mubr.bf16.mxu0 0
      %1062 = vmatmul.mubr.bf16.gmra.mrb[0].mxu0 %v723
      %v1063 = vpop.f32.mrb[0].mxu0
      %v1064 = vadd.f32 %v319, %v1063
      %v1065 = vpop.f32.mrb[0].mxu0
      %v1066 = vpop.f32.mrb[0].mxu0
      %v1067 = vadd.f32 %v319, %v1066
      %v1068 = vpop.f32.mrb[0].mxu0
      %1069 = vmatprep.mubr.bf16.mxu0 0
      %1070 = vmatmul.mubr.bf16.gmra.mrb[0].mxu0 %v726
      %v1071 = vpop.f32.mrb[0].mxu0
      %v1072 = vadd.f32 %v319, %v1071
      %v1073 = vpop.f32.mrb[0].mxu0
      %v1074 = vpop.f32.mrb[0].mxu0
      %v1075 = vadd.f32 %v319, %v1074
      %v1076 = vpop.f32.mrb[0].mxu0
      %1077 = vmatprep.mubr.bf16.mxu0 0
      %1078 = vmatmul.mubr.bf16.gmra.mrb[0].mxu0 %v729
      %v1079 = vpop.f32.mrb[0].mxu0
      %v1080 = vadd.f32 %v319, %v1079
      %v1081 = vpop.f32.mrb[0].mxu0
      %v1082 = vpop.f32.mrb[0].mxu0
      %v1083 = vadd.f32 %v319, %v1082
      %v1084 = vpop.f32.mrb[0].mxu0
      %1085 = vmatprep.mubr.bf16.mxu0 0
      %1086 = vmatmul.mubr.bf16.gmra.mrb[0].mxu0 %v732
      %v1087 = vpop.f32.mrb[0].mxu0
      %v1088 = vadd.f32 %v319, %v1087
      %v1089 = vpop.f32.mrb[0].mxu0
      %v1090 = vpop.f32.mrb[0].mxu0
      %v1091 = vadd.f32 %v319, %v1090
      %v1092 = vpop.f32.mrb[0].mxu0
      %1093 = vmatprep.mubr.bf16.mxu0 0
      %1094 = vmatmul.mubr.bf16.gmra.mrb[0].mxu0 %v735
      %v1095 = vpop.f32.mrb[0].mxu0
      %v1096 = vadd.f32 %v319, %v1095
      %v1097 = vpop.f32.mrb[0].mxu0
      %v1098 = vpop.f32.mrb[0].mxu0
      %v1099 = vadd.f32 %v319, %v1098
      %v1100 = vpop.f32.mrb[0].mxu0
      %1101 = vmatprep.mubr.bf16.mxu0 0
      %1102 = vmatmul.mubr.bf16.gmra.mrb[0].mxu0 %v738
      %v1103 = vpop.f32.mrb[0].mxu0
      %v1104 = vadd.f32 %v319, %v1103
      %v1105 = vpop.f32.mrb[0].mxu0
      %v1106 = vpop.f32.mrb[0].mxu0
      %v1107 = vadd.f32 %v319, %v1106
      %v1108 = vpop.f32.mrb[0].mxu0
      %1109 = vmatprep.mubr.bf16.mxu0 0
      %1110 = vmatmul.mubr.bf16.gmra.mrb[0].mxu0 %v741
      %v1111 = vpop.f32.mrb[0].mxu0
      %v1112 = vadd.f32 %v319, %v1111
      %v1113 = vpop.f32.mrb[0].mxu0
      %v1114 = vpop.f32.mrb[0].mxu0
      %v1115 = vadd.f32 %v319, %v1114
      %v1116 = vpop.f32.mrb[0].mxu0
      %1117 = vmatprep.mubr.bf16.mxu0 0
      %1118 = vmatmul.mubr.bf16.gmra.mrb[0].mxu0 %v744
      %v1119 = vpop.f32.mrb[0].mxu0
      %v1120 = vadd.f32 %v319, %v1119
      %v1121 = vpop.f32.mrb[0].mxu0
      %v1122 = vpop.f32.mrb[0].mxu0
      %v1123 = vadd.f32 %v319, %v1122
      %v1124 = vpop.f32.mrb[0].mxu0
      %1125 = vmatprep.mubr.bf16.mxu0 0
      %1126 = vmatmul.mubr.bf16.gmra.mrb[0].mxu0 %v747
      %v1127 = vpop.f32.mrb[0].mxu0
      %v1128 = vadd.f32 %v319, %v1127
      %v1129 = vpop.f32.mrb[0].mxu0
      %v1130 = vpop.f32.mrb[0].mxu0
      %v1131 = vadd.f32 %v319, %v1130
      %v1132 = vpop.f32.mrb[0].mxu0
      %1133 = vmatprep.mubr.bf16.mxu0 0
      %1134 = vmatmul.mubr.bf16.gmra.mrb[0].mxu0 %v750
      %v1135 = vpop.f32.mrb[0].mxu0
      %v1136 = vadd.f32 %v319, %v1135
      %v1137 = vpop.f32.mrb[0].mxu0
      %v1138 = vpop.f32.mrb[0].mxu0
      %v1139 = vadd.f32 %v319, %v1138
      %v1140 = vpop.f32.mrb[0].mxu0
      %1141 = vmatprep.mubr.bf16.mxu0 0
      %1142 = vmatmul.mubr.bf16.gmra.mrb[0].mxu0 %v753
      %v1143 = vpop.f32.mrb[0].mxu0
      %v1144 = vadd.f32 %v319, %v1143
      %v1145 = vpop.f32.mrb[0].mxu0
      %v1146 = vpop.f32.mrb[0].mxu0
      %v1147 = vadd.f32 %v319, %v1146
      %v1148 = vpop.f32.mrb[0].mxu0
      %1149 = vmatprep.mubr.bf16.mxu0 0
      %1150 = vmatmul.mubr.bf16.gmra.mrb[0].mxu0 %v756
      %v1151 = vpop.f32.mrb[0].mxu0
      %v1152 = vadd.f32 %v319, %v1151
      %v1153 = vpop.f32.mrb[0].mxu0
      %v1154 = vpop.f32.mrb[0].mxu0
      %v1155 = vadd.f32 %v319, %v1154
      %v1156 = vpop.f32.mrb[0].mxu0
      %1157 = vmatprep.mubr.bf16.mxu0 0
      %1158 = vmatmul.mubr.bf16.gmra.mrb[0].mxu0 %v759
      %v1159 = vpop.f32.mrb[0].mxu0
      %v1160 = vadd.f32 %v319, %v1159
      %v1161 = vpop.f32.mrb[0].mxu0
      %v1162 = vpop.f32.mrb[0].mxu0
      %v1163 = vadd.f32 %v319, %v1162
      %v1164 = vpop.f32.mrb[0].mxu0
      %1165 = vmatprep.mubr.bf16.mxu0 0
      %1166 = vmatmul.mubr.bf16.gmra.mrb[0].mxu0 %v762
      %v1167 = vpop.f32.mrb[0].mxu0
      %v1168 = vadd.f32 %v319, %v1167
      %v1169 = vpop.f32.mrb[0].mxu0
      %v1170 = vpop.f32.mrb[0].mxu0
      %v1171 = vadd.f32 %v319, %v1170
      %v1172 = vpop.f32.mrb[0].mxu0
      %1173 = vmatprep.mubr.bf16.mxu0 0
      %1174 = vmatmul.mubr.bf16.gmra.mrb[0].mxu0 %v765
      %v1175 = vpop.f32.mrb[0].mxu0
      %v1176 = vadd.f32 %v319, %v1175
      %v1177 = vpop.f32.mrb[0].mxu0
      %v1178 = vpop.f32.mrb[0].mxu0
      %v1179 = vadd.f32 %v319, %v1178
      %v1180 = vpop.f32.mrb[0].mxu0
      %1181 = vmatprep.mubr.bf16.mxu0 0
      %1182 = vmatmul.mubr.bf16.gmra.mrb[0].mxu0 %v768
      %v1183 = vpop.f32.mrb[0].mxu0
      %v1184 = vadd.f32 %v319, %v1183
      %v1185 = vpop.f32.mrb[0].mxu0
      %v1186 = vpop.f32.mrb[0].mxu0
      %v1187 = vadd.f32 %v319, %v1186
      %v1188 = vpop.f32.mrb[0].mxu0
      %1189 = vmatprep.mubr.bf16.mxu0 0
      %1190 = vmatmul.mubr.bf16.gmra.mrb[0].mxu0 %v771
      %v1191 = vpop.f32.mrb[0].mxu0
      %v1192 = vadd.f32 %v319, %v1191
      %v1193 = vpop.f32.mrb[0].mxu0
      %v1194 = vpop.f32.mrb[0].mxu0
      %v1195 = vadd.f32 %v319, %v1194
      %v1196 = vpop.f32.mrb[0].mxu0
      %1197 = vmatprep.mubr.bf16.mxu0 0
      %1198 = vmatmul.mubr.bf16.gmra.mrb[0].mxu0 %v774
      %v1199 = vpop.f32.mrb[0].mxu0
      %v1200 = vadd.f32 %v319, %v1199
      %v1201 = vpop.f32.mrb[0].mxu0
      %v1202 = vpop.f32.mrb[0].mxu0
      %v1203 = vadd.f32 %v319, %v1202
      %v1204 = vpop.f32.mrb[0].mxu0
      %1205 = vmatprep.mubr.bf16.mxu0 0
      %1206 = vmatmul.mubr.bf16.gmra.mrb[0].mxu0 %v777
      %v1207 = vpop.f32.mrb[0].mxu0
      %v1208 = vadd.f32 %v319, %v1207
      %v1209 = vpop.f32.mrb[0].mxu0
      %v1210 = vpop.f32.mrb[0].mxu0
      %v1211 = vadd.f32 %v319, %v1210
      %v1212 = vpop.f32.mrb[0].mxu0
      %1213 = vmatprep.mubr.bf16.mxu0 0
      %1214 = vmatmul.mubr.bf16.gmra.mrb[0].mxu0 %v780
      %v1215 = vpop.f32.mrb[0].mxu0
      %v1216 = vadd.f32 %v319, %v1215
      %v1217 = vpop.f32.mrb[0].mxu0
      %v1218 = vpop.f32.mrb[0].mxu0
      %v1219 = vadd.f32 %v319, %v1218
      %v1220 = vpop.f32.mrb[0].mxu0
      %1221 = vmatprep.mubr.bf16.mxu0 0
      %1222 = vmatmul.mubr.bf16.gmra.mrb[0].mxu0 %v783
      %v1223 = vpop.f32.mrb[0].mxu0
      %v1224 = vadd.f32 %v319, %v1223
      %v1225 = vpop.f32.mrb[0].mxu0
      %v1226 = vpop.f32.mrb[0].mxu0
      %v1227 = vadd.f32 %v319, %v1226
      %v1228 = vpop.f32.mrb[0].mxu0
      %1229 = vmatprep.mubr.bf16.mxu0 0
      %1230 = vmatmul.mubr.bf16.gmra.mrb[0].mxu0 %v786
      %v1231 = vpop.f32.mrb[0].mxu0
      %v1232 = vadd.f32 %v319, %v1231
      %v1233 = vpop.f32.mrb[0].mxu0
      %v1234 = vpop.f32.mrb[0].mxu0
      %v1235 = vadd.f32 %v319, %v1234
      %v1236 = vpop.f32.mrb[0].mxu0
      %1237 = vmatprep.mubr.bf16.mxu0 0
      %1238 = vmatmul.mubr.bf16.gmra.mrb[0].mxu0 %v789
      %v1239 = vpop.f32.mrb[0].mxu0
      %v1240 = vadd.f32 %v319, %v1239
      %v1241 = vpop.f32.mrb[0].mxu0
      %v1242 = vpop.f32.mrb[0].mxu0
      %v1243 = vadd.f32 %v319, %v1242
      %v1244 = vpop.f32.mrb[0].mxu0
      %1245 = vmatprep.mubr.bf16.mxu0 0
      %1246 = vmatmul.mubr.bf16.gmra.mrb[0].mxu0 %v792
      %v1247 = vpop.f32.mrb[0].mxu0
      %v1248 = vadd.f32 %v319, %v1247
      %v1249 = vpop.f32.mrb[0].mxu0
      %v1250 = vpop.f32.mrb[0].mxu0
      %v1251 = vadd.f32 %v319, %v1250
      %v1252 = vpop.f32.mrb[0].mxu0
      %1253 = vmatprep.mubr.bf16.mxu0 0
      %1254 = vmatmul.mubr.bf16.gmra.mrb[0].mxu0 %v795
      %v1255 = vpop.f32.mrb[0].mxu0
      %v1256 = vadd.f32 %v319, %v1255
      %v1257 = vpop.f32.mrb[0].mxu0
      %v1258 = vpop.f32.mrb[0].mxu0
      %v1259 = vadd.f32 %v319, %v1258
      %v1260 = vpop.f32.mrb[0].mxu0
      %1261 = vmatprep.mubr.bf16.mxu0 0
      %1262 = vmatmul.mubr.bf16.gmra.mrb[0].mxu0 %v798
      %v1263 = vpop.f32.mrb[0].mxu0
      %v1264 = vadd.f32 %v319, %v1263
      %v1265 = vpop.f32.mrb[0].mxu0
      %v1266 = vpop.f32.mrb[0].mxu0
      %v1267 = vadd.f32 %v319, %v1266
      %v1268 = vpop.f32.mrb[0].mxu0
      %1269 = vmatprep.mubr.bf16.mxu0 0
      %1270 = vmatmul.mubr.bf16.gmra.mrb[0].mxu0 %v801
      %v1271 = vpop.f32.mrb[0].mxu0
      %v1272 = vadd.f32 %v319, %v1271
      %v1273 = vpop.f32.mrb[0].mxu0
      %v1274 = vpop.f32.mrb[0].mxu0
      %v1275 = vadd.f32 %v319, %v1274
      %v1276 = vpop.f32.mrb[0].mxu0
      %1277 = vmatprep.mubr.bf16.mxu0 0
      %1278 = vmatmul.mubr.bf16.gmra.mrb[0].mxu0 %v804
      %v1279 = vpop.f32.mrb[0].mxu0
      %v1280 = vadd.f32 %v319, %v1279
      %v1281 = vpop.f32.mrb[0].mxu0
      %v1282 = vpop.f32.mrb[0].mxu0
      %v1283 = vadd.f32 %v319, %v1282
      %v1284 = vpop.f32.mrb[0].mxu0
      %1285 = vmatprep.mubr.bf16.mxu0 0
      %1286 = vmatmul.mubr.bf16.gmra.mrb[0].mxu0 %v807
      %v1287 = vpop.f32.mrb[0].mxu0
      %v1288 = vadd.f32 %v319, %v1287
      %v1289 = vpop.f32.mrb[0].mxu0
      %v1290 = vpop.f32.mrb[0].mxu0
      %v1291 = vadd.f32 %v319, %v1290
      %v1292 = vpop.f32.mrb[0].mxu0
      %1293 = vmatprep.mubr.bf16.mxu0 0
      %1294 = vmatmul.mubr.bf16.gmra.mrb[0].mxu0 %v810
      %v1295 = vpop.f32.mrb[0].mxu0
      %v1296 = vadd.f32 %v319, %v1295
      %v1297 = vpop.f32.mrb[0].mxu0
      %v1298 = vpop.f32.mrb[0].mxu0
      %v1299 = vadd.f32 %v319, %v1298
      %v1300 = vpop.f32.mrb[0].mxu0
      %1301 = vmatprep.mubr.bf16.mxu0 0
      %1302 = vmatmul.mubr.bf16.gmra.mrb[0].mxu0 %v813
      %v1303 = vpop.f32.mrb[0].mxu0
      %v1304 = vadd.f32 %v319, %v1303
      %v1305 = vpop.f32.mrb[0].mxu0
      %v1306 = vpop.f32.mrb[0].mxu0
      %v1307 = vadd.f32 %v319, %v1306
      %v1308 = vpop.f32.mrb[0].mxu0
      %1309 = vmatprep.mubr.bf16.mxu0 0
      %1310 = vmatmul.mubr.bf16.gmra.mrb[0].mxu0 %v816
      %v1311 = vpop.f32.mrb[0].mxu0
      %v1312 = vadd.f32 %v319, %v1311
      %v1313 = vpop.f32.mrb[0].mxu0
      %v1314 = vpop.f32.mrb[0].mxu0
      %v1315 = vadd.f32 %v319, %v1314
      %v1316 = vpop.f32.mrb[0].mxu0
      %1317 = vmatprep.mubr.bf16.mxu0 0
      %1318 = vmatmul.mubr.bf16.gmra.mrb[0].mxu0 %v819
      %v1319 = vpop.f32.mrb[0].mxu0
      %v1320 = vadd.f32 %v319, %v1319
      %v1321 = vpop.f32.mrb[0].mxu0
      %v1322 = vpop.f32.mrb[0].mxu0
      %v1323 = vadd.f32 %v319, %v1322
      %v1324 = vpop.f32.mrb[0].mxu0
      %1325 = vmatprep.mubr.bf16.mxu0 0
      %1326 = vmatmul.mubr.bf16.gmra.mrb[0].mxu0 %v822
      %v1327 = vpop.f32.mrb[0].mxu0
      %v1328 = vadd.f32 %v319, %v1327
      %v1329 = vpop.f32.mrb[0].mxu0
      %v1330 = vpop.f32.mrb[0].mxu0
      %v1331 = vadd.f32 %v319, %v1330
      %v1332 = vpop.f32.mrb[0].mxu0
      %1333 = vmatprep.mubr.bf16.mxu0 0
      %1334 = vmatmul.mubr.bf16.gmra.mrb[0].mxu0 %v825
      %v1335 = vpop.f32.mrb[0].mxu0
      %v1336 = vadd.f32 %v319, %v1335
      %v1337 = vpop.f32.mrb[0].mxu0
      %v1338 = vpop.f32.mrb[0].mxu0
      %v1339 = vadd.f32 %v319, %v1338
      %v1340 = vpop.f32.mrb[0].mxu0
      %1341 = vmatprep.mubr.bf16.mxu0 0
      %1342 = vmatmul.mubr.bf16.gmra.mrb[0].mxu0 %v828
      %v1343 = vpop.f32.mrb[0].mxu0
      %v1344 = vadd.f32 %v319, %v1343
      %v1345 = vpop.f32.mrb[0].mxu0
      %v1346 = vpop.f32.mrb[0].mxu0
      %v1347 = vadd.f32 %v319, %v1346
      %v1348 = vpop.f32.mrb[0].mxu0
      %1349 = vmatprep.mubr.bf16.mxu0 0
      %1350 = vmatmul.mubr.bf16.gmra.mrb[0].mxu0 %v831
      %v1351 = vpop.f32.mrb[0].mxu0
      %v1352 = vadd.f32 %v319, %v1351
      %v1353 = vpop.f32.mrb[0].mxu0
      %v1354 = vpop.f32.mrb[0].mxu0
      %v1355 = vadd.f32 %v319, %v1354
      %v1356 = vpop.f32.mrb[0].mxu0
      %1357 = vmatprep.mubr.bf16.mxu0 0
      %1358 = vmatmul.mubr.bf16.gmra.mrb[0].mxu0 %v834
      %v1359 = vpop.f32.mrb[0].mxu0
      %v1360 = vadd.f32 %v319, %v1359
      %v1361 = vpop.f32.mrb[0].mxu0
      %v1362 = vpop.f32.mrb[0].mxu0
      %v1363 = vadd.f32 %v319, %v1362
      %v1364 = vpop.f32.mrb[0].mxu0
      %1365 = vmatprep.mubr.bf16.mxu0 0
      %1366 = vmatmul.mubr.bf16.gmra.mrb[0].mxu0 %v837
      %v1367 = vpop.f32.mrb[0].mxu0
      %v1368 = vadd.f32 %v319, %v1367
      %v1369 = vpop.f32.mrb[0].mxu0
      %v1370 = vpop.f32.mrb[0].mxu0
      %v1371 = vadd.f32 %v319, %v1370
      %v1372 = vpop.f32.mrb[0].mxu0
      %1373 = vmatprep.mubr.bf16.mxu0 0
      %1374 = vmatmul.mubr.bf16.gmra.mrb[0].mxu0 %v840
      %v1375 = vpop.f32.mrb[0].mxu0
      %v1376 = vadd.f32 %v319, %v1375
      %v1377 = vpop.f32.mrb[0].mxu0
      %v1378 = vpop.f32.mrb[0].mxu0
      %v1379 = vadd.f32 %v319, %v1378
      %v1380 = vpop.f32.mrb[0].mxu0
      %1381 = vmatprep.mubr.bf16.mxu0 0
      %1382 = vmatmul.mubr.bf16.gmra.mrb[0].mxu0 %v843
      %v1383 = vpop.f32.mrb[0].mxu0
      %v1384 = vadd.f32 %v319, %v1383
      %v1385 = vpop.f32.mrb[0].mxu0
      %v1386 = vpop.f32.mrb[0].mxu0
      %v1387 = vadd.f32 %v319, %v1386
      %v1388 = vpop.f32.mrb[0].mxu0
      %1389 = vdwg.mxu0
      %v1390 = vmax.f32 %v880, 0.0
      %v1391 = vmax.f32 %v883, 0.0
      %v1392 = vmax.f32 %v888, 0.0
      %v1393 = vmax.f32 %v891, 0.0
      %v1394 = vmax.f32 %v896, 0.0
      %v1395 = vmax.f32 %v899, 0.0
      %v1396 = vmax.f32 %v904, 0.0
      %v1397 = vmax.f32 %v907, 0.0
      %v1398 = vmax.f32 %v912, 0.0
      %v1399 = vmax.f32 %v915, 0.0
      %v1400 = vmax.f32 %v920, 0.0
      %v1401 = vmax.f32 %v923, 0.0
      %v1402 = vmax.f32 %v928, 0.0
      %v1403 = vmax.f32 %v931, 0.0
      %v1404 = vmax.f32 %v936, 0.0
      %v1405 = vmax.f32 %v939, 0.0
      %v1406 = vmax.f32 %v944, 0.0
      %v1407 = vmax.f32 %v947, 0.0
      %v1408 = vmax.f32 %v952, 0.0
      %v1409 = vmax.f32 %v955, 0.0
      %v1410 = vmax.f32 %v960, 0.0
      %v1411 = vmax.f32 %v963, 0.0
      %v1412 = vmax.f32 %v968, 0.0
      %v1413 = vmax.f32 %v971, 0.0
      %v1414 = vmax.f32 %v976, 0.0
      %v1415 = vmax.f32 %v979, 0.0
      %v1416 = vmax.f32 %v984, 0.0
      %v1417 = vmax.f32 %v987, 0.0
      %v1418 = vmax.f32 %v992, 0.0
      %v1419 = vmax.f32 %v995, 0.0
      %v1420 = vmax.f32 %v1000, 0.0
      %v1421 = vmax.f32 %v1003, 0.0
      %v1422 = vmax.f32 %v1008, 0.0
      %v1423 = vmax.f32 %v1011, 0.0
      %v1424 = vmax.f32 %v1016, 0.0
      %v1425 = vmax.f32 %v1019, 0.0
      %v1426 = vmax.f32 %v1024, 0.0
      %v1427 = vmax.f32 %v1027, 0.0
      %v1428 = vmax.f32 %v1032, 0.0
      %v1429 = vmax.f32 %v1035, 0.0
      %v1430 = vmax.f32 %v1040, 0.0
      %v1431 = vmax.f32 %v1043, 0.0
      %v1432 = vmax.f32 %v1048, 0.0
      %v1433 = vmax.f32 %v1051, 0.0
      %v1434 = vmax.f32 %v1056, 0.0
      %v1435 = vmax.f32 %v1059, 0.0
      %v1436 = vmax.f32 %v1064, 0.0
      %v1437 = vmax.f32 %v1067, 0.0
      %v1438 = vmax.f32 %v1072, 0.0
      %v1439 = vmax.f32 %v1075, 0.0
      %v1440 = vmax.f32 %v1080, 0.0
      %v1441 = vmax.f32 %v1083, 0.0
      %v1442 = vmax.f32 %v1088, 0.0
      %v1443 = vmax.f32 %v1091, 0.0
      %v1444 = vmax.f32 %v1096, 0.0
      %v1445 = vmax.f32 %v1099, 0.0
      %v1446 = vmax.f32 %v1104, 0.0
      %v1447 = vmax.f32 %v1107, 0.0
      %v1448 = vmax.f32 %v1112, 0.0
      %v1449 = vmax.f32 %v1115, 0.0
      %v1450 = vmax.f32 %v1120, 0.0
      %v1451 = vmax.f32 %v1123, 0.0
      %v1452 = vmax.f32 %v1128, 0.0
      %v1453 = vmax.f32 %v1131, 0.0
      %v1454 = vmax.f32 %v1136, 0.0
      %v1455 = vmax.f32 %v1139, 0.0
      %v1456 = vmax.f32 %v1144, 0.0
      %v1457 = vmax.f32 %v1147, 0.0
      %v1458 = vmax.f32 %v1152, 0.0
      %v1459 = vmax.f32 %v1155, 0.0
      %v1460 = vmax.f32 %v1160, 0.0
      %v1461 = vmax.f32 %v1163, 0.0
      %v1462 = vmax.f32 %v1168, 0.0
      %v1463 = vmax.f32 %v1171, 0.0
      %v1464 = vmax.f32 %v1176, 0.0
      %v1465 = vmax.f32 %v1179, 0.0
      %v1466 = vmax.f32 %v1184, 0.0
      %v1467 = vmax.f32 %v1187, 0.0
      %v1468 = vmax.f32 %v1192, 0.0
      %v1469 = vmax.f32 %v1195, 0.0
      %v1470 = vmax.f32 %v1200, 0.0
      %v1471 = vmax.f32 %v1203, 0.0
      %v1472 = vmax.f32 %v1208, 0.0
      %v1473 = vmax.f32 %v1211, 0.0
      %v1474 = vmax.f32 %v1216, 0.0
      %v1475 = vmax.f32 %v1219, 0.0
      %v1476 = vmax.f32 %v1224, 0.0
      %v1477 = vmax.f32 %v1227, 0.0
      %v1478 = vmax.f32 %v1232, 0.0
      %v1479 = vmax.f32 %v1235, 0.0
      %v1480 = vmax.f32 %v1240, 0.0
      %v1481 = vmax.f32 %v1243, 0.0
      %v1482 = vmax.f32 %v1248, 0.0
      %v1483 = vmax.f32 %v1251, 0.0
      %v1484 = vmax.f32 %v1256, 0.0
      %v1485 = vmax.f32 %v1259, 0.0
      %v1486 = vmax.f32 %v1264, 0.0
      %v1487 = vmax.f32 %v1267, 0.0
      %v1488 = vmax.f32 %v1272, 0.0
      %v1489 = vmax.f32 %v1275, 0.0
      %v1490 = vmax.f32 %v1280, 0.0
      %v1491 = vmax.f32 %v1283, 0.0
      %v1492 = vmax.f32 %v1288, 0.0
      %v1493 = vmax.f32 %v1291, 0.0
      %v1494 = vmax.f32 %v1296, 0.0
      %v1495 = vmax.f32 %v1299, 0.0
      %v1496 = vmax.f32 %v1304, 0.0
      %v1497 = vmax.f32 %v1307, 0.0
      %v1498 = vmax.f32 %v1312, 0.0
      %v1499 = vmax.f32 %v1315, 0.0
      %v1500 = vmax.f32 %v1320, 0.0
      %v1501 = vmax.f32 %v1323, 0.0
      %v1502 = vmax.f32 %v1328, 0.0
      %v1503 = vmax.f32 %v1331, 0.0
      %v1504 = vmax.f32 %v1336, 0.0
      %v1505 = vmax.f32 %v1339, 0.0
      %v1506 = vmax.f32 %v1344, 0.0
      %v1507 = vmax.f32 %v1347, 0.0
      %v1508 = vmax.f32 %v1352, 0.0
      %v1509 = vmax.f32 %v1355, 0.0
      %v1510 = vmax.f32 %v1360, 0.0
      %v1511 = vmax.f32 %v1363, 0.0
      %v1512 = vmax.f32 %v1368, 0.0
      %v1513 = vmax.f32 %v1371, 0.0
      %v1514 = vmax.f32 %v1376, 0.0
      %v1515 = vmax.f32 %v1379, 0.0
      %v1516 = vmax.f32 %v1384, 0.0
      %v1517 = vmax.f32 %v1387, 0.0
      %v1518 = vpack.c.bf16 %v1391, %v1390
      %v1519 = vpack.c.bf16 %v1393, %v1392
      %v1520 = vpack.c.bf16 %v1395, %v1394
      %v1521 = vpack.c.bf16 %v1397, %v1396
      %v1522 = vpack.c.bf16 %v1399, %v1398
      %v1523 = vpack.c.bf16 %v1401, %v1400
      %v1524 = vpack.c.bf16 %v1403, %v1402
      %v1525 = vpack.c.bf16 %v1405, %v1404
      %v1526 = vpack.c.bf16 %v1407, %v1406
      %v1527 = vpack.c.bf16 %v1409, %v1408
      %v1528 = vpack.c.bf16 %v1411, %v1410
      %v1529 = vpack.c.bf16 %v1413, %v1412
      %v1530 = vpack.c.bf16 %v1415, %v1414
      %v1531 = vpack.c.bf16 %v1417, %v1416
      %v1532 = vpack.c.bf16 %v1419, %v1418
      %v1533 = vpack.c.bf16 %v1421, %v1420
      %v1534 = vpack.c.bf16 %v1423, %v1422
      %v1535 = vpack.c.bf16 %v1425, %v1424
      %v1536 = vpack.c.bf16 %v1427, %v1426
      %v1537 = vpack.c.bf16 %v1429, %v1428
      %v1538 = vpack.c.bf16 %v1431, %v1430
      %v1539 = vpack.c.bf16 %v1433, %v1432
      %v1540 = vpack.c.bf16 %v1435, %v1434
      %v1541 = vpack.c.bf16 %v1437, %v1436
      %v1542 = vpack.c.bf16 %v1439, %v1438
      %v1543 = vpack.c.bf16 %v1441, %v1440
      %v1544 = vpack.c.bf16 %v1443, %v1442
      %v1545 = vpack.c.bf16 %v1445, %v1444
      %v1546 = vpack.c.bf16 %v1447, %v1446
      %v1547 = vpack.c.bf16 %v1449, %v1448
      %v1548 = vpack.c.bf16 %v1451, %v1450
      %v1549 = vpack.c.bf16 %v1453, %v1452
      %v1550 = vpack.c.bf16 %v1455, %v1454
      %v1551 = vpack.c.bf16 %v1457, %v1456
      %v1552 = vpack.c.bf16 %v1459, %v1458
      %v1553 = vpack.c.bf16 %v1461, %v1460
      %v1554 = vpack.c.bf16 %v1463, %v1462
      %v1555 = vpack.c.bf16 %v1465, %v1464
      %v1556 = vpack.c.bf16 %v1467, %v1466
      %v1557 = vpack.c.bf16 %v1469, %v1468
      %v1558 = vpack.c.bf16 %v1471, %v1470
      %v1559 = vpack.c.bf16 %v1473, %v1472
      %v1560 = vpack.c.bf16 %v1475, %v1474
      %v1561 = vpack.c.bf16 %v1477, %v1476
      %v1562 = vpack.c.bf16 %v1479, %v1478
      %v1563 = vpack.c.bf16 %v1481, %v1480
      %v1564 = vpack.c.bf16 %v1483, %v1482
      %v1565 = vpack.c.bf16 %v1485, %v1484
      %v1566 = vpack.c.bf16 %v1487, %v1486
      %v1567 = vpack.c.bf16 %v1489, %v1488
      %v1568 = vpack.c.bf16 %v1491, %v1490
      %v1569 = vpack.c.bf16 %v1493, %v1492
      %v1570 = vpack.c.bf16 %v1495, %v1494
      %v1571 = vpack.c.bf16 %v1497, %v1496
      %v1572 = vpack.c.bf16 %v1499, %v1498
      %v1573 = vpack.c.bf16 %v1501, %v1500
      %v1574 = vpack.c.bf16 %v1503, %v1502
      %v1575 = vpack.c.bf16 %v1505, %v1504
      %v1576 = vpack.c.bf16 %v1507, %v1506
      %v1577 = vpack.c.bf16 %v1509, %v1508
      %v1578 = vpack.c.bf16 %v1511, %v1510
      %v1579 = vpack.c.bf16 %v1513, %v1512
      %v1580 = vpack.c.bf16 %v1515, %v1514
      %v1581 = vpack.c.bf16 %v1517, %v1516
      %v1582 = vunpack.c.l.bf16 %v313
      %v1583 = vlaneseq
      %v1584 = vshrl.u32 %v1583, 7
      %v1585 = vsub.s32 0, %v1584
      %v1586 = vrot.slane %v1582, %v1585
      %v1603 = vunpack.c.l.b16 %v280
      %v1604 = vunpack.c.l.b16 %v281
      %v1605 = vunpack.c.l.b16 %v282
      %v1606 = vunpack.c.l.b16 %v283
      %v1607 = vunpack.c.l.b16 %v284
      %v1608 = vunpack.c.l.b16 %v285
      %v1609 = vunpack.c.l.b16 %v286
      %v1610 = vunpack.c.l.b16 %v287
      %v1611 = vunpack.c.l.b16 %v288
      %v1612 = vunpack.c.l.b16 %v289
      %v1613 = vunpack.c.l.b16 %v290
      %v1614 = vunpack.c.l.b16 %v291
      %v1615 = vunpack.c.l.b16 %v292
      %v1616 = vunpack.c.l.b16 %v293
      %v1617 = vunpack.c.l.b16 %v294
      %v1618 = vunpack.c.l.b16 %v295
      %v1619 = vpack.c.b16 %v1604, %v1603
      %v1620 = vpack.c.b16 %v1606, %v1605
      %v1621 = vpack.c.b16 %v1608, %v1607
      %v1622 = vpack.c.b16 %v1610, %v1609
      %v1623 = vpack.c.b16 %v1612, %v1611
      %v1624 = vpack.c.b16 %v1614, %v1613
      %v1625 = vpack.c.b16 %v1616, %v1615
      %v1626 = vpack.c.b16 %v1618, %v1617
      %1635 = vmatprep.subr.bf16.mxu0 0
      %1636 = vmatpush1.bf16.msra.mxu0 %v1619
      %1637 = vmatprep.subr.bf16.mxu0 0
      %1638 = vmatpush1.bf16.msra.mxu0 %v1620
      %1639 = vmatprep.subr.bf16.mxu0 0
      %1640 = vmatpush1.bf16.msra.mxu0 %v1621
      %1641 = vmatprep.subr.bf16.mxu0 0
      %1642 = vmatpush1.bf16.msra.mxu0 %v1622
      %1643 = vmatprep.subr.bf16.mxu0 0
      %1644 = vmatpush1.bf16.msra.mxu0 %v1623
      %1645 = vmatprep.subr.bf16.mxu0 0
      %1646 = vmatpush1.bf16.msra.mxu0 %v1624
      %1647 = vmatprep.subr.bf16.mxu0 0
      %1648 = vmatpush1.bf16.msra.mxu0 %v1625
      %1649 = vmatprep.subr.bf16.mxu0 0
      %1650 = vmatpush1.bf16.msra.mxu0 %v1626
      %1651 = vmatprep.subr.bf16.mxu0 0
      %1652 = vmatpush1.bf16.msra.mxu0 0
      %1653 = vmatprep.subr.bf16.mxu0 0
      %1654 = vmatpush1.bf16.msra.mxu0 0
      %1655 = vmatprep.subr.bf16.mxu0 0
      %1656 = vmatpush1.bf16.msra.mxu0 0
      %1657 = vmatprep.subr.bf16.mxu0 0
      %1658 = vmatpush1.bf16.msra.mxu0 0
      %1659 = vmatprep.subr.bf16.mxu0 0
      %1660 = vmatpush1.bf16.msra.mxu0 0
      %1661 = vmatprep.subr.bf16.mxu0 0
      %1662 = vmatpush1.bf16.msra.mxu0 0
      %1663 = vmatprep.subr.bf16.mxu0 0
      %1664 = vmatpush1.bf16.msra.mxu0 0
      %1665 = vmatprep.subr.bf16.mxu0 0
      %1666 = vmatpush1.bf16.msra.mxu0 0
      %1667 = vmatprep.mubr.bf16.mxu0 0
      %1668 = vmatmul.mubr.bf16.gmra.mrb[0].mxu0 %v1518
      %v1669 = vpop.f32.mrb[0].mxu0
      %v1670 = vadd.f32 %v1586, %v1669
      %v1671 = vpop.f32.mrb[0].mxu0
      %v1672 = vpop.f32.mrb[0].mxu0
      %v1673 = vadd.f32 %v1586, %v1672
      %v1674 = vpop.f32.mrb[0].mxu0
      %1675 = vmatprep.mubr.bf16.mxu0 0
      %1676 = vmatmul.mubr.bf16.gmra.mrb[0].mxu0 %v1519
      %v1677 = vpop.f32.mrb[0].mxu0
      %v1678 = vadd.f32 %v1586, %v1677
      %v1679 = vpop.f32.mrb[0].mxu0
      %v1680 = vpop.f32.mrb[0].mxu0
      %v1681 = vadd.f32 %v1586, %v1680
      %v1682 = vpop.f32.mrb[0].mxu0
      %1683 = vmatprep.mubr.bf16.mxu0 0
      %1684 = vmatmul.mubr.bf16.gmra.mrb[0].mxu0 %v1520
      %v1685 = vpop.f32.mrb[0].mxu0
      %v1686 = vadd.f32 %v1586, %v1685
      %v1687 = vpop.f32.mrb[0].mxu0
      %v1688 = vpop.f32.mrb[0].mxu0
      %v1689 = vadd.f32 %v1586, %v1688
      %v1690 = vpop.f32.mrb[0].mxu0
      %1691 = vmatprep.mubr.bf16.mxu0 0
      %1692 = vmatmul.mubr.bf16.gmra.mrb[0].mxu0 %v1521
      %v1693 = vpop.f32.mrb[0].mxu0
      %v1694 = vadd.f32 %v1586, %v1693
      %v1695 = vpop.f32.mrb[0].mxu0
      %v1696 = vpop.f32.mrb[0].mxu0
      %v1697 = vadd.f32 %v1586, %v1696
      %v1698 = vpop.f32.mrb[0].mxu0
      %1699 = vmatprep.mubr.bf16.mxu0 0
      %1700 = vmatmul.mubr.bf16.gmra.mrb[0].mxu0 %v1522
      %v1701 = vpop.f32.mrb[0].mxu0
      %v1702 = vadd.f32 %v1586, %v1701
      %v1703 = vpop.f32.mrb[0].mxu0
      %v1704 = vpop.f32.mrb[0].mxu0
      %v1705 = vadd.f32 %v1586, %v1704
      %v1706 = vpop.f32.mrb[0].mxu0
      %1707 = vmatprep.mubr.bf16.mxu0 0
      %1708 = vmatmul.mubr.bf16.gmra.mrb[0].mxu0 %v1523
      %v1709 = vpop.f32.mrb[0].mxu0
      %v1710 = vadd.f32 %v1586, %v1709
      %v1711 = vpop.f32.mrb[0].mxu0
      %v1712 = vpop.f32.mrb[0].mxu0
      %v1713 = vadd.f32 %v1586, %v1712
      %v1714 = vpop.f32.mrb[0].mxu0
      %1715 = vmatprep.mubr.bf16.mxu0 0
      %1716 = vmatmul.mubr.bf16.gmra.mrb[0].mxu0 %v1524
      %v1717 = vpop.f32.mrb[0].mxu0
      %v1718 = vadd.f32 %v1586, %v1717
      %v1719 = vpop.f32.mrb[0].mxu0
      %v1720 = vpop.f32.mrb[0].mxu0
      %v1721 = vadd.f32 %v1586, %v1720
      %v1722 = vpop.f32.mrb[0].mxu0
      %1723 = vmatprep.mubr.bf16.mxu0 0
      %1724 = vmatmul.mubr.bf16.gmra.mrb[0].mxu0 %v1525
      %v1725 = vpop.f32.mrb[0].mxu0
      %v1726 = vadd.f32 %v1586, %v1725
      %v1727 = vpop.f32.mrb[0].mxu0
      %v1728 = vpop.f32.mrb[0].mxu0
      %v1729 = vadd.f32 %v1586, %v1728
      %v1730 = vpop.f32.mrb[0].mxu0
      %1731 = vmatprep.mubr.bf16.mxu0 0
      %1732 = vmatmul.mubr.bf16.gmra.mrb[0].mxu0 %v1526
      %v1733 = vpop.f32.mrb[0].mxu0
      %v1734 = vadd.f32 %v1586, %v1733
      %v1735 = vpop.f32.mrb[0].mxu0
      %v1736 = vpop.f32.mrb[0].mxu0
      %v1737 = vadd.f32 %v1586, %v1736
      %v1738 = vpop.f32.mrb[0].mxu0
      %1739 = vmatprep.mubr.bf16.mxu0 0
      %1740 = vmatmul.mubr.bf16.gmra.mrb[0].mxu0 %v1527
      %v1741 = vpop.f32.mrb[0].mxu0
      %v1742 = vadd.f32 %v1586, %v1741
      %v1743 = vpop.f32.mrb[0].mxu0
      %v1744 = vpop.f32.mrb[0].mxu0
      %v1745 = vadd.f32 %v1586, %v1744
      %v1746 = vpop.f32.mrb[0].mxu0
      %1747 = vmatprep.mubr.bf16.mxu0 0
      %1748 = vmatmul.mubr.bf16.gmra.mrb[0].mxu0 %v1528
      %v1749 = vpop.f32.mrb[0].mxu0
      %v1750 = vadd.f32 %v1586, %v1749
      %v1751 = vpop.f32.mrb[0].mxu0
      %v1752 = vpop.f32.mrb[0].mxu0
      %v1753 = vadd.f32 %v1586, %v1752
      %v1754 = vpop.f32.mrb[0].mxu0
      %1755 = vmatprep.mubr.bf16.mxu0 0
      %1756 = vmatmul.mubr.bf16.gmra.mrb[0].mxu0 %v1529
      %v1757 = vpop.f32.mrb[0].mxu0
      %v1758 = vadd.f32 %v1586, %v1757
      %v1759 = vpop.f32.mrb[0].mxu0
      %v1760 = vpop.f32.mrb[0].mxu0
      %v1761 = vadd.f32 %v1586, %v1760
      %v1762 = vpop.f32.mrb[0].mxu0
      %1763 = vmatprep.mubr.bf16.mxu0 0
      %1764 = vmatmul.mubr.bf16.gmra.mrb[0].mxu0 %v1530
      %v1765 = vpop.f32.mrb[0].mxu0
      %v1766 = vadd.f32 %v1586, %v1765
      %v1767 = vpop.f32.mrb[0].mxu0
      %v1768 = vpop.f32.mrb[0].mxu0
      %v1769 = vadd.f32 %v1586, %v1768
      %v1770 = vpop.f32.mrb[0].mxu0
      %1771 = vmatprep.mubr.bf16.mxu0 0
      %1772 = vmatmul.mubr.bf16.gmra.mrb[0].mxu0 %v1531
      %v1773 = vpop.f32.mrb[0].mxu0
      %v1774 = vadd.f32 %v1586, %v1773
      %v1775 = vpop.f32.mrb[0].mxu0
      %v1776 = vpop.f32.mrb[0].mxu0
      %v1777 = vadd.f32 %v1586, %v1776
      %v1778 = vpop.f32.mrb[0].mxu0
      %1779 = vmatprep.mubr.bf16.mxu0 0
      %1780 = vmatmul.mubr.bf16.gmra.mrb[0].mxu0 %v1532
      %v1781 = vpop.f32.mrb[0].mxu0
      %v1782 = vadd.f32 %v1586, %v1781
      %v1783 = vpop.f32.mrb[0].mxu0
      %v1784 = vpop.f32.mrb[0].mxu0
      %v1785 = vadd.f32 %v1586, %v1784
      %v1786 = vpop.f32.mrb[0].mxu0
      %1787 = vmatprep.mubr.bf16.mxu0 0
      %1788 = vmatmul.mubr.bf16.gmra.mrb[0].mxu0 %v1533
      %v1789 = vpop.f32.mrb[0].mxu0
      %v1790 = vadd.f32 %v1586, %v1789
      %v1791 = vpop.f32.mrb[0].mxu0
      %v1792 = vpop.f32.mrb[0].mxu0
      %v1793 = vadd.f32 %v1586, %v1792
      %v1794 = vpop.f32.mrb[0].mxu0
      %1795 = vmatprep.mubr.bf16.mxu0 0
      %1796 = vmatmul.mubr.bf16.gmra.mrb[0].mxu0 %v1534
      %v1797 = vpop.f32.mrb[0].mxu0
      %v1798 = vadd.f32 %v1586, %v1797
      %v1799 = vpop.f32.mrb[0].mxu0
      %v1800 = vpop.f32.mrb[0].mxu0
      %v1801 = vadd.f32 %v1586, %v1800
      %v1802 = vpop.f32.mrb[0].mxu0
      %1803 = vmatprep.mubr.bf16.mxu0 0
      %1804 = vmatmul.mubr.bf16.gmra.mrb[0].mxu0 %v1535
      %v1805 = vpop.f32.mrb[0].mxu0
      %v1806 = vadd.f32 %v1586, %v1805
      %v1807 = vpop.f32.mrb[0].mxu0
      %v1808 = vpop.f32.mrb[0].mxu0
      %v1809 = vadd.f32 %v1586, %v1808
      %v1810 = vpop.f32.mrb[0].mxu0
      %1811 = vmatprep.mubr.bf16.mxu0 0
      %1812 = vmatmul.mubr.bf16.gmra.mrb[0].mxu0 %v1536
      %v1813 = vpop.f32.mrb[0].mxu0
      %v1814 = vadd.f32 %v1586, %v1813
      %v1815 = vpop.f32.mrb[0].mxu0
      %v1816 = vpop.f32.mrb[0].mxu0
      %v1817 = vadd.f32 %v1586, %v1816
      %v1818 = vpop.f32.mrb[0].mxu0
      %1819 = vmatprep.mubr.bf16.mxu0 0
      %1820 = vmatmul.mubr.bf16.gmra.mrb[0].mxu0 %v1537
      %v1821 = vpop.f32.mrb[0].mxu0
      %v1822 = vadd.f32 %v1586, %v1821
      %v1823 = vpop.f32.mrb[0].mxu0
      %v1824 = vpop.f32.mrb[0].mxu0
      %v1825 = vadd.f32 %v1586, %v1824
      %v1826 = vpop.f32.mrb[0].mxu0
      %1827 = vmatprep.mubr.bf16.mxu0 0
      %1828 = vmatmul.mubr.bf16.gmra.mrb[0].mxu0 %v1538
      %v1829 = vpop.f32.mrb[0].mxu0
      %v1830 = vadd.f32 %v1586, %v1829
      %v1831 = vpop.f32.mrb[0].mxu0
      %v1832 = vpop.f32.mrb[0].mxu0
      %v1833 = vadd.f32 %v1586, %v1832
      %v1834 = vpop.f32.mrb[0].mxu0
      %1835 = vmatprep.mubr.bf16.mxu0 0
      %1836 = vmatmul.mubr.bf16.gmra.mrb[0].mxu0 %v1539
      %v1837 = vpop.f32.mrb[0].mxu0
      %v1838 = vadd.f32 %v1586, %v1837
      %v1839 = vpop.f32.mrb[0].mxu0
      %v1840 = vpop.f32.mrb[0].mxu0
      %v1841 = vadd.f32 %v1586, %v1840
      %v1842 = vpop.f32.mrb[0].mxu0
      %1843 = vmatprep.mubr.bf16.mxu0 0
      %1844 = vmatmul.mubr.bf16.gmra.mrb[0].mxu0 %v1540
      %v1845 = vpop.f32.mrb[0].mxu0
      %v1846 = vadd.f32 %v1586, %v1845
      %v1847 = vpop.f32.mrb[0].mxu0
      %v1848 = vpop.f32.mrb[0].mxu0
      %v1849 = vadd.f32 %v1586, %v1848
      %v1850 = vpop.f32.mrb[0].mxu0
      %1851 = vmatprep.mubr.bf16.mxu0 0
      %1852 = vmatmul.mubr.bf16.gmra.mrb[0].mxu0 %v1541
      %v1853 = vpop.f32.mrb[0].mxu0
      %v1854 = vadd.f32 %v1586, %v1853
      %v1855 = vpop.f32.mrb[0].mxu0
      %v1856 = vpop.f32.mrb[0].mxu0
      %v1857 = vadd.f32 %v1586, %v1856
      %v1858 = vpop.f32.mrb[0].mxu0
      %1859 = vmatprep.mubr.bf16.mxu0 0
      %1860 = vmatmul.mubr.bf16.gmra.mrb[0].mxu0 %v1542
      %v1861 = vpop.f32.mrb[0].mxu0
      %v1862 = vadd.f32 %v1586, %v1861
      %v1863 = vpop.f32.mrb[0].mxu0
      %v1864 = vpop.f32.mrb[0].mxu0
      %v1865 = vadd.f32 %v1586, %v1864
      %v1866 = vpop.f32.mrb[0].mxu0
      %1867 = vmatprep.mubr.bf16.mxu0 0
      %1868 = vmatmul.mubr.bf16.gmra.mrb[0].mxu0 %v1543
      %v1869 = vpop.f32.mrb[0].mxu0
      %v1870 = vadd.f32 %v1586, %v1869
      %v1871 = vpop.f32.mrb[0].mxu0
      %v1872 = vpop.f32.mrb[0].mxu0
      %v1873 = vadd.f32 %v1586, %v1872
      %v1874 = vpop.f32.mrb[0].mxu0
      %1875 = vmatprep.mubr.bf16.mxu0 0
      %1876 = vmatmul.mubr.bf16.gmra.mrb[0].mxu0 %v1544
      %v1877 = vpop.f32.mrb[0].mxu0
      %v1878 = vadd.f32 %v1586, %v1877
      %v1879 = vpop.f32.mrb[0].mxu0
      %v1880 = vpop.f32.mrb[0].mxu0
      %v1881 = vadd.f32 %v1586, %v1880
      %v1882 = vpop.f32.mrb[0].mxu0
      %1883 = vmatprep.mubr.bf16.mxu0 0
      %1884 = vmatmul.mubr.bf16.gmra.mrb[0].mxu0 %v1545
      %v1885 = vpop.f32.mrb[0].mxu0
      %v1886 = vadd.f32 %v1586, %v1885
      %v1887 = vpop.f32.mrb[0].mxu0
      %v1888 = vpop.f32.mrb[0].mxu0
      %v1889 = vadd.f32 %v1586, %v1888
      %v1890 = vpop.f32.mrb[0].mxu0
      %1891 = vmatprep.mubr.bf16.mxu0 0
      %1892 = vmatmul.mubr.bf16.gmra.mrb[0].mxu0 %v1546
      %v1893 = vpop.f32.mrb[0].mxu0
      %v1894 = vadd.f32 %v1586, %v1893
      %v1895 = vpop.f32.mrb[0].mxu0
      %v1896 = vpop.f32.mrb[0].mxu0
      %v1897 = vadd.f32 %v1586, %v1896
      %v1898 = vpop.f32.mrb[0].mxu0
      %1899 = vmatprep.mubr.bf16.mxu0 0
      %1900 = vmatmul.mubr.bf16.gmra.mrb[0].mxu0 %v1547
      %v1901 = vpop.f32.mrb[0].mxu0
      %v1902 = vadd.f32 %v1586, %v1901
      %v1903 = vpop.f32.mrb[0].mxu0
      %v1904 = vpop.f32.mrb[0].mxu0
      %v1905 = vadd.f32 %v1586, %v1904
      %v1906 = vpop.f32.mrb[0].mxu0
      %1907 = vmatprep.mubr.bf16.mxu0 0
      %1908 = vmatmul.mubr.bf16.gmra.mrb[0].mxu0 %v1548
      %v1909 = vpop.f32.mrb[0].mxu0
      %v1910 = vadd.f32 %v1586, %v1909
      %v1911 = vpop.f32.mrb[0].mxu0
      %v1912 = vpop.f32.mrb[0].mxu0
      %v1913 = vadd.f32 %v1586, %v1912
      %v1914 = vpop.f32.mrb[0].mxu0
      %1915 = vmatprep.mubr.bf16.mxu0 0
      %1916 = vmatmul.mubr.bf16.gmra.mrb[0].mxu0 %v1549
      %v1917 = vpop.f32.mrb[0].mxu0
      %v1918 = vadd.f32 %v1586, %v1917
      %v1919 = vpop.f32.mrb[0].mxu0
      %v1920 = vpop.f32.mrb[0].mxu0
      %v1921 = vadd.f32 %v1586, %v1920
      %v1922 = vpop.f32.mrb[0].mxu0
      %1923 = vmatprep.mubr.bf16.mxu0 0
      %1924 = vmatmul.mubr.bf16.gmra.mrb[0].mxu0 %v1550
      %v1925 = vpop.f32.mrb[0].mxu0
      %v1926 = vadd.f32 %v1586, %v1925
      %v1927 = vpop.f32.mrb[0].mxu0
      %v1928 = vpop.f32.mrb[0].mxu0
      %v1929 = vadd.f32 %v1586, %v1928
      %v1930 = vpop.f32.mrb[0].mxu0
      %1931 = vmatprep.mubr.bf16.mxu0 0
      %1932 = vmatmul.mubr.bf16.gmra.mrb[0].mxu0 %v1551
      %v1933 = vpop.f32.mrb[0].mxu0
      %v1934 = vadd.f32 %v1586, %v1933
      %v1935 = vpop.f32.mrb[0].mxu0
      %v1936 = vpop.f32.mrb[0].mxu0
      %v1937 = vadd.f32 %v1586, %v1936
      %v1938 = vpop.f32.mrb[0].mxu0
      %1939 = vmatprep.mubr.bf16.mxu0 0
      %1940 = vmatmul.mubr.bf16.gmra.mrb[0].mxu0 %v1552
      %v1941 = vpop.f32.mrb[0].mxu0
      %v1942 = vadd.f32 %v1586, %v1941
      %v1943 = vpop.f32.mrb[0].mxu0
      %v1944 = vpop.f32.mrb[0].mxu0
      %v1945 = vadd.f32 %v1586, %v1944
      %v1946 = vpop.f32.mrb[0].mxu0
      %1947 = vmatprep.mubr.bf16.mxu0 0
      %1948 = vmatmul.mubr.bf16.gmra.mrb[0].mxu0 %v1553
      %v1949 = vpop.f32.mrb[0].mxu0
      %v1950 = vadd.f32 %v1586, %v1949
      %v1951 = vpop.f32.mrb[0].mxu0
      %v1952 = vpop.f32.mrb[0].mxu0
      %v1953 = vadd.f32 %v1586, %v1952
      %v1954 = vpop.f32.mrb[0].mxu0
      %1955 = vmatprep.mubr.bf16.mxu0 0
      %1956 = vmatmul.mubr.bf16.gmra.mrb[0].mxu0 %v1554
      %v1957 = vpop.f32.mrb[0].mxu0
      %v1958 = vadd.f32 %v1586, %v1957
      %v1959 = vpop.f32.mrb[0].mxu0
      %v1960 = vpop.f32.mrb[0].mxu0
      %v1961 = vadd.f32 %v1586, %v1960
      %v1962 = vpop.f32.mrb[0].mxu0
      %1963 = vmatprep.mubr.bf16.mxu0 0
      %1964 = vmatmul.mubr.bf16.gmra.mrb[0].mxu0 %v1555
      %v1965 = vpop.f32.mrb[0].mxu0
      %v1966 = vadd.f32 %v1586, %v1965
      %v1967 = vpop.f32.mrb[0].mxu0
      %v1968 = vpop.f32.mrb[0].mxu0
      %v1969 = vadd.f32 %v1586, %v1968
      %v1970 = vpop.f32.mrb[0].mxu0
      %1971 = vmatprep.mubr.bf16.mxu0 0
      %1972 = vmatmul.mubr.bf16.gmra.mrb[0].mxu0 %v1556
      %v1973 = vpop.f32.mrb[0].mxu0
      %v1974 = vadd.f32 %v1586, %v1973
      %v1975 = vpop.f32.mrb[0].mxu0
      %v1976 = vpop.f32.mrb[0].mxu0
      %v1977 = vadd.f32 %v1586, %v1976
      %v1978 = vpop.f32.mrb[0].mxu0
      %1979 = vmatprep.mubr.bf16.mxu0 0
      %1980 = vmatmul.mubr.bf16.gmra.mrb[0].mxu0 %v1557
      %v1981 = vpop.f32.mrb[0].mxu0
      %v1982 = vadd.f32 %v1586, %v1981
      %v1983 = vpop.f32.mrb[0].mxu0
      %v1984 = vpop.f32.mrb[0].mxu0
      %v1985 = vadd.f32 %v1586, %v1984
      %v1986 = vpop.f32.mrb[0].mxu0
      %1987 = vmatprep.mubr.bf16.mxu0 0
      %1988 = vmatmul.mubr.bf16.gmra.mrb[0].mxu0 %v1558
      %v1989 = vpop.f32.mrb[0].mxu0
      %v1990 = vadd.f32 %v1586, %v1989
      %v1991 = vpop.f32.mrb[0].mxu0
      %v1992 = vpop.f32.mrb[0].mxu0
      %v1993 = vadd.f32 %v1586, %v1992
      %v1994 = vpop.f32.mrb[0].mxu0
      %1995 = vmatprep.mubr.bf16.mxu0 0
      %1996 = vmatmul.mubr.bf16.gmra.mrb[0].mxu0 %v1559
      %v1997 = vpop.f32.mrb[0].mxu0
      %v1998 = vadd.f32 %v1586, %v1997
      %v1999 = vpop.f32.mrb[0].mxu0
      %v2000 = vpop.f32.mrb[0].mxu0
      %v2001 = vadd.f32 %v1586, %v2000
      %v2002 = vpop.f32.mrb[0].mxu0
      %2003 = vmatprep.mubr.bf16.mxu0 0
      %2004 = vmatmul.mubr.bf16.gmra.mrb[0].mxu0 %v1560
      %v2005 = vpop.f32.mrb[0].mxu0
      %v2006 = vadd.f32 %v1586, %v2005
      %v2007 = vpop.f32.mrb[0].mxu0
      %v2008 = vpop.f32.mrb[0].mxu0
      %v2009 = vadd.f32 %v1586, %v2008
      %v2010 = vpop.f32.mrb[0].mxu0
      %2011 = vmatprep.mubr.bf16.mxu0 0
      %2012 = vmatmul.mubr.bf16.gmra.mrb[0].mxu0 %v1561
      %v2013 = vpop.f32.mrb[0].mxu0
      %v2014 = vadd.f32 %v1586, %v2013
      %v2015 = vpop.f32.mrb[0].mxu0
      %v2016 = vpop.f32.mrb[0].mxu0
      %v2017 = vadd.f32 %v1586, %v2016
      %v2018 = vpop.f32.mrb[0].mxu0
      %2019 = vmatprep.mubr.bf16.mxu0 0
      %2020 = vmatmul.mubr.bf16.gmra.mrb[0].mxu0 %v1562
      %v2021 = vpop.f32.mrb[0].mxu0
      %v2022 = vadd.f32 %v1586, %v2021
      %v2023 = vpop.f32.mrb[0].mxu0
      %v2024 = vpop.f32.mrb[0].mxu0
      %v2025 = vadd.f32 %v1586, %v2024
      %v2026 = vpop.f32.mrb[0].mxu0
      %2027 = vmatprep.mubr.bf16.mxu0 0
      %2028 = vmatmul.mubr.bf16.gmra.mrb[0].mxu0 %v1563
      %v2029 = vpop.f32.mrb[0].mxu0
      %v2030 = vadd.f32 %v1586, %v2029
      %v2031 = vpop.f32.mrb[0].mxu0
      %v2032 = vpop.f32.mrb[0].mxu0
      %v2033 = vadd.f32 %v1586, %v2032
      %v2034 = vpop.f32.mrb[0].mxu0
      %2035 = vmatprep.mubr.bf16.mxu0 0
      %2036 = vmatmul.mubr.bf16.gmra.mrb[0].mxu0 %v1564
      %v2037 = vpop.f32.mrb[0].mxu0
      %v2038 = vadd.f32 %v1586, %v2037
      %v2039 = vpop.f32.mrb[0].mxu0
      %v2040 = vpop.f32.mrb[0].mxu0
      %v2041 = vadd.f32 %v1586, %v2040
      %v2042 = vpop.f32.mrb[0].mxu0
      %2043 = vmatprep.mubr.bf16.mxu0 0
      %2044 = vmatmul.mubr.bf16.gmra.mrb[0].mxu0 %v1565
      %v2045 = vpop.f32.mrb[0].mxu0
      %v2046 = vadd.f32 %v1586, %v2045
      %v2047 = vpop.f32.mrb[0].mxu0
      %v2048 = vpop.f32.mrb[0].mxu0
      %v2049 = vadd.f32 %v1586, %v2048
      %v2050 = vpop.f32.mrb[0].mxu0
      %2051 = vmatprep.mubr.bf16.mxu0 0
      %2052 = vmatmul.mubr.bf16.gmra.mrb[0].mxu0 %v1566
      %v2053 = vpop.f32.mrb[0].mxu0
      %v2054 = vadd.f32 %v1586, %v2053
      %v2055 = vpop.f32.mrb[0].mxu0
      %v2056 = vpop.f32.mrb[0].mxu0
      %v2057 = vadd.f32 %v1586, %v2056
      %v2058 = vpop.f32.mrb[0].mxu0
      %2059 = vmatprep.mubr.bf16.mxu0 0
      %2060 = vmatmul.mubr.bf16.gmra.mrb[0].mxu0 %v1567
      %v2061 = vpop.f32.mrb[0].mxu0
      %v2062 = vadd.f32 %v1586, %v2061
      %v2063 = vpop.f32.mrb[0].mxu0
      %v2064 = vpop.f32.mrb[0].mxu0
      %v2065 = vadd.f32 %v1586, %v2064
      %v2066 = vpop.f32.mrb[0].mxu0
      %2067 = vmatprep.mubr.bf16.mxu0 0
      %2068 = vmatmul.mubr.bf16.gmra.mrb[0].mxu0 %v1568
      %v2069 = vpop.f32.mrb[0].mxu0
      %v2070 = vadd.f32 %v1586, %v2069
      %v2071 = vpop.f32.mrb[0].mxu0
      %v2072 = vpop.f32.mrb[0].mxu0
      %v2073 = vadd.f32 %v1586, %v2072
      %v2074 = vpop.f32.mrb[0].mxu0
      %2075 = vmatprep.mubr.bf16.mxu0 0
      %2076 = vmatmul.mubr.bf16.gmra.mrb[0].mxu0 %v1569
      %v2077 = vpop.f32.mrb[0].mxu0
      %v2078 = vadd.f32 %v1586, %v2077
      %v2079 = vpop.f32.mrb[0].mxu0
      %v2080 = vpop.f32.mrb[0].mxu0
      %v2081 = vadd.f32 %v1586, %v2080
      %v2082 = vpop.f32.mrb[0].mxu0
      %2083 = vmatprep.mubr.bf16.mxu0 0
      %2084 = vmatmul.mubr.bf16.gmra.mrb[0].mxu0 %v1570
      %v2085 = vpop.f32.mrb[0].mxu0
      %v2086 = vadd.f32 %v1586, %v2085
      %v2087 = vpop.f32.mrb[0].mxu0
      %v2088 = vpop.f32.mrb[0].mxu0
      %v2089 = vadd.f32 %v1586, %v2088
      %v2090 = vpop.f32.mrb[0].mxu0
      %2091 = vmatprep.mubr.bf16.mxu0 0
      %2092 = vmatmul.mubr.bf16.gmra.mrb[0].mxu0 %v1571
      %v2093 = vpop.f32.mrb[0].mxu0
      %v2094 = vadd.f32 %v1586, %v2093
      %v2095 = vpop.f32.mrb[0].mxu0
      %v2096 = vpop.f32.mrb[0].mxu0
      %v2097 = vadd.f32 %v1586, %v2096
      %v2098 = vpop.f32.mrb[0].mxu0
      %2099 = vmatprep.mubr.bf16.mxu0 0
      %2100 = vmatmul.mubr.bf16.gmra.mrb[0].mxu0 %v1572
      %v2101 = vpop.f32.mrb[0].mxu0
      %v2102 = vadd.f32 %v1586, %v2101
      %v2103 = vpop.f32.mrb[0].mxu0
      %v2104 = vpop.f32.mrb[0].mxu0
      %v2105 = vadd.f32 %v1586, %v2104
      %v2106 = vpop.f32.mrb[0].mxu0
      %2107 = vmatprep.mubr.bf16.mxu0 0
      %2108 = vmatmul.mubr.bf16.gmra.mrb[0].mxu0 %v1573
      %v2109 = vpop.f32.mrb[0].mxu0
      %v2110 = vadd.f32 %v1586, %v2109
      %v2111 = vpop.f32.mrb[0].mxu0
      %v2112 = vpop.f32.mrb[0].mxu0
      %v2113 = vadd.f32 %v1586, %v2112
      %v2114 = vpop.f32.mrb[0].mxu0
      %2115 = vmatprep.mubr.bf16.mxu0 0
      %2116 = vmatmul.mubr.bf16.gmra.mrb[0].mxu0 %v1574
      %v2117 = vpop.f32.mrb[0].mxu0
      %v2118 = vadd.f32 %v1586, %v2117
      %v2119 = vpop.f32.mrb[0].mxu0
      %v2120 = vpop.f32.mrb[0].mxu0
      %v2121 = vadd.f32 %v1586, %v2120
      %v2122 = vpop.f32.mrb[0].mxu0
      %2123 = vmatprep.mubr.bf16.mxu0 0
      %2124 = vmatmul.mubr.bf16.gmra.mrb[0].mxu0 %v1575
      %v2125 = vpop.f32.mrb[0].mxu0
      %v2126 = vadd.f32 %v1586, %v2125
      %v2127 = vpop.f32.mrb[0].mxu0
      %v2128 = vpop.f32.mrb[0].mxu0
      %v2129 = vadd.f32 %v1586, %v2128
      %v2130 = vpop.f32.mrb[0].mxu0
      %2131 = vmatprep.mubr.bf16.mxu0 0
      %2132 = vmatmul.mubr.bf16.gmra.mrb[0].mxu0 %v1576
      %v2133 = vpop.f32.mrb[0].mxu0
      %v2134 = vadd.f32 %v1586, %v2133
      %v2135 = vpop.f32.mrb[0].mxu0
      %v2136 = vpop.f32.mrb[0].mxu0
      %v2137 = vadd.f32 %v1586, %v2136
      %v2138 = vpop.f32.mrb[0].mxu0
      %2139 = vmatprep.mubr.bf16.mxu0 0
      %2140 = vmatmul.mubr.bf16.gmra.mrb[0].mxu0 %v1577
      %v2141 = vpop.f32.mrb[0].mxu0
      %v2142 = vadd.f32 %v1586, %v2141
      %v2143 = vpop.f32.mrb[0].mxu0
      %v2144 = vpop.f32.mrb[0].mxu0
      %v2145 = vadd.f32 %v1586, %v2144
      %v2146 = vpop.f32.mrb[0].mxu0
      %2147 = vmatprep.mubr.bf16.mxu0 0
      %2148 = vmatmul.mubr.bf16.gmra.mrb[0].mxu0 %v1578
      %v2149 = vpop.f32.mrb[0].mxu0
      %v2150 = vadd.f32 %v1586, %v2149
      %v2151 = vpop.f32.mrb[0].mxu0
      %v2152 = vpop.f32.mrb[0].mxu0
      %v2153 = vadd.f32 %v1586, %v2152
      %v2154 = vpop.f32.mrb[0].mxu0
      %2155 = vmatprep.mubr.bf16.mxu0 0
      %2156 = vmatmul.mubr.bf16.gmra.mrb[0].mxu0 %v1579
      %v2157 = vpop.f32.mrb[0].mxu0
      %v2158 = vadd.f32 %v1586, %v2157
      %v2159 = vpop.f32.mrb[0].mxu0
      %v2160 = vpop.f32.mrb[0].mxu0
      %v2161 = vadd.f32 %v1586, %v2160
      %v2162 = vpop.f32.mrb[0].mxu0
      %2163 = vmatprep.mubr.bf16.mxu0 0
      %2164 = vmatmul.mubr.bf16.gmra.mrb[0].mxu0 %v1580
      %v2165 = vpop.f32.mrb[0].mxu0
      %v2166 = vadd.f32 %v1586, %v2165
      %v2167 = vpop.f32.mrb[0].mxu0
      %v2168 = vpop.f32.mrb[0].mxu0
      %v2169 = vadd.f32 %v1586, %v2168
      %v2170 = vpop.f32.mrb[0].mxu0
      %2171 = vmatprep.mubr.bf16.mxu0 0
      %2172 = vmatmul.mubr.bf16.gmra.mrb[0].mxu0 %v1581
      %v2173 = vpop.f32.mrb[0].mxu0
      %v2174 = vadd.f32 %v1586, %v2173
      %v2175 = vpop.f32.mrb[0].mxu0
      %v2176 = vpop.f32.mrb[0].mxu0
      %v2177 = vadd.f32 %v1586, %v2176
      %v2178 = vpop.f32.mrb[0].mxu0
      %2179 = vdwg.mxu0
      %v2180 = vmax.f32 %v1670, 0.0
      %v2181 = vmax.f32 %v1673, 0.0
      %v2182 = vmax.f32 %v1678, 0.0
      %v2183 = vmax.f32 %v1681, 0.0
      %v2184 = vmax.f32 %v1686, 0.0
      %v2185 = vmax.f32 %v1689, 0.0
      %v2186 = vmax.f32 %v1694, 0.0
      %v2187 = vmax.f32 %v1697, 0.0
      %v2188 = vmax.f32 %v1702, 0.0
      %v2189 = vmax.f32 %v1705, 0.0
      %v2190 = vmax.f32 %v1710, 0.0
      %v2191 = vmax.f32 %v1713, 0.0
      %v2192 = vmax.f32 %v1718, 0.0
      %v2193 = vmax.f32 %v1721, 0.0
      %v2194 = vmax.f32 %v1726, 0.0
      %v2195 = vmax.f32 %v1729, 0.0
      %v2196 = vmax.f32 %v1734, 0.0
      %v2197 = vmax.f32 %v1737, 0.0
      %v2198 = vmax.f32 %v1742, 0.0
      %v2199 = vmax.f32 %v1745, 0.0
      %v2200 = vmax.f32 %v1750, 0.0
      %v2201 = vmax.f32 %v1753, 0.0
      %v2202 = vmax.f32 %v1758, 0.0
      %v2203 = vmax.f32 %v1761, 0.0
      %v2204 = vmax.f32 %v1766, 0.0
      %v2205 = vmax.f32 %v1769, 0.0
      %v2206 = vmax.f32 %v1774, 0.0
      %v2207 = vmax.f32 %v1777, 0.0
      %v2208 = vmax.f32 %v1782, 0.0
      %v2209 = vmax.f32 %v1785, 0.0
      %v2210 = vmax.f32 %v1790, 0.0
      %v2211 = vmax.f32 %v1793, 0.0
      %v2212 = vmax.f32 %v1798, 0.0
      %v2213 = vmax.f32 %v1801, 0.0
      %v2214 = vmax.f32 %v1806, 0.0
      %v2215 = vmax.f32 %v1809, 0.0
      %v2216 = vmax.f32 %v1814, 0.0
      %v2217 = vmax.f32 %v1817, 0.0
      %v2218 = vmax.f32 %v1822, 0.0
      %v2219 = vmax.f32 %v1825, 0.0
      %v2220 = vmax.f32 %v1830, 0.0
      %v2221 = vmax.f32 %v1833, 0.0
      %v2222 = vmax.f32 %v1838, 0.0
      %v2223 = vmax.f32 %v1841, 0.0
      %v2224 = vmax.f32 %v1846, 0.0
      %v2225 = vmax.f32 %v1849, 0.0
      %v2226 = vmax.f32 %v1854, 0.0
      %v2227 = vmax.f32 %v1857, 0.0
      %v2228 = vmax.f32 %v1862, 0.0
      %v2229 = vmax.f32 %v1865, 0.0
      %v2230 = vmax.f32 %v1870, 0.0
      %v2231 = vmax.f32 %v1873, 0.0
      %v2232 = vmax.f32 %v1878, 0.0
      %v2233 = vmax.f32 %v1881, 0.0
      %v2234 = vmax.f32 %v1886, 0.0
      %v2235 = vmax.f32 %v1889, 0.0
      %v2236 = vmax.f32 %v1894, 0.0
      %v2237 = vmax.f32 %v1897, 0.0
      %v2238 = vmax.f32 %v1902, 0.0
      %v2239 = vmax.f32 %v1905, 0.0
      %v2240 = vmax.f32 %v1910, 0.0
      %v2241 = vmax.f32 %v1913, 0.0
      %v2242 = vmax.f32 %v1918, 0.0
      %v2243 = vmax.f32 %v1921, 0.0
      %v2244 = vmax.f32 %v1926, 0.0
      %v2245 = vmax.f32 %v1929, 0.0
      %v2246 = vmax.f32 %v1934, 0.0
      %v2247 = vmax.f32 %v1937, 0.0
      %v2248 = vmax.f32 %v1942, 0.0
      %v2249 = vmax.f32 %v1945, 0.0
      %v2250 = vmax.f32 %v1950, 0.0
      %v2251 = vmax.f32 %v1953, 0.0
      %v2252 = vmax.f32 %v1958, 0.0
      %v2253 = vmax.f32 %v1961, 0.0
      %v2254 = vmax.f32 %v1966, 0.0
      %v2255 = vmax.f32 %v1969, 0.0
      %v2256 = vmax.f32 %v1974, 0.0
      %v2257 = vmax.f32 %v1977, 0.0
      %v2258 = vmax.f32 %v1982, 0.0
      %v2259 = vmax.f32 %v1985, 0.0
      %v2260 = vmax.f32 %v1990, 0.0
      %v2261 = vmax.f32 %v1993, 0.0
      %v2262 = vmax.f32 %v1998, 0.0
      %v2263 = vmax.f32 %v2001, 0.0
      %v2264 = vmax.f32 %v2006, 0.0
      %v2265 = vmax.f32 %v2009, 0.0
      %v2266 = vmax.f32 %v2014, 0.0
      %v2267 = vmax.f32 %v2017, 0.0
      %v2268 = vmax.f32 %v2022, 0.0
      %v2269 = vmax.f32 %v2025, 0.0
      %v2270 = vmax.f32 %v2030, 0.0
      %v2271 = vmax.f32 %v2033, 0.0
      %v2272 = vmax.f32 %v2038, 0.0
      %v2273 = vmax.f32 %v2041, 0.0
      %v2274 = vmax.f32 %v2046, 0.0
      %v2275 = vmax.f32 %v2049, 0.0
      %v2276 = vmax.f32 %v2054, 0.0
      %v2277 = vmax.f32 %v2057, 0.0
      %v2278 = vmax.f32 %v2062, 0.0
      %v2279 = vmax.f32 %v2065, 0.0
      %v2280 = vmax.f32 %v2070, 0.0
      %v2281 = vmax.f32 %v2073, 0.0
      %v2282 = vmax.f32 %v2078, 0.0
      %v2283 = vmax.f32 %v2081, 0.0
      %v2284 = vmax.f32 %v2086, 0.0
      %v2285 = vmax.f32 %v2089, 0.0
      %v2286 = vmax.f32 %v2094, 0.0
      %v2287 = vmax.f32 %v2097, 0.0
      %v2288 = vmax.f32 %v2102, 0.0
      %v2289 = vmax.f32 %v2105, 0.0
      %v2290 = vmax.f32 %v2110, 0.0
      %v2291 = vmax.f32 %v2113, 0.0
      %v2292 = vmax.f32 %v2118, 0.0
      %v2293 = vmax.f32 %v2121, 0.0
      %v2294 = vmax.f32 %v2126, 0.0
      %v2295 = vmax.f32 %v2129, 0.0
      %v2296 = vmax.f32 %v2134, 0.0
      %v2297 = vmax.f32 %v2137, 0.0
      %v2298 = vmax.f32 %v2142, 0.0
      %v2299 = vmax.f32 %v2145, 0.0
      %v2300 = vmax.f32 %v2150, 0.0
      %v2301 = vmax.f32 %v2153, 0.0
      %v2302 = vmax.f32 %v2158, 0.0
      %v2303 = vmax.f32 %v2161, 0.0
      %v2304 = vmax.f32 %v2166, 0.0
      %v2305 = vmax.f32 %v2169, 0.0
      %v2306 = vmax.f32 %v2174, 0.0
      %v2307 = vmax.f32 %v2177, 0.0
      %v2308 = vpack.c.bf16 %v2181, %v2180
      %v2309 = vpack.c.bf16 %v2183, %v2182
      %v2310 = vpack.c.bf16 %v2185, %v2184
      %v2311 = vpack.c.bf16 %v2187, %v2186
      %v2312 = vpack.c.bf16 %v2189, %v2188
      %v2313 = vpack.c.bf16 %v2191, %v2190
      %v2314 = vpack.c.bf16 %v2193, %v2192
      %v2315 = vpack.c.bf16 %v2195, %v2194
      %v2316 = vpack.c.bf16 %v2197, %v2196
      %v2317 = vpack.c.bf16 %v2199, %v2198
      %v2318 = vpack.c.bf16 %v2201, %v2200
      %v2319 = vpack.c.bf16 %v2203, %v2202
      %v2320 = vpack.c.bf16 %v2205, %v2204
      %v2321 = vpack.c.bf16 %v2207, %v2206
      %v2322 = vpack.c.bf16 %v2209, %v2208
      %v2323 = vpack.c.bf16 %v2211, %v2210
      %v2324 = vpack.c.bf16 %v2213, %v2212
      %v2325 = vpack.c.bf16 %v2215, %v2214
      %v2326 = vpack.c.bf16 %v2217, %v2216
      %v2327 = vpack.c.bf16 %v2219, %v2218
      %v2328 = vpack.c.bf16 %v2221, %v2220
      %v2329 = vpack.c.bf16 %v2223, %v2222
      %v2330 = vpack.c.bf16 %v2225, %v2224
      %v2331 = vpack.c.bf16 %v2227, %v2226
      %v2332 = vpack.c.bf16 %v2229, %v2228
      %v2333 = vpack.c.bf16 %v2231, %v2230
      %v2334 = vpack.c.bf16 %v2233, %v2232
      %v2335 = vpack.c.bf16 %v2235, %v2234
      %v2336 = vpack.c.bf16 %v2237, %v2236
      %v2337 = vpack.c.bf16 %v2239, %v2238
      %v2338 = vpack.c.bf16 %v2241, %v2240
      %v2339 = vpack.c.bf16 %v2243, %v2242
      %v2340 = vpack.c.bf16 %v2245, %v2244
      %v2341 = vpack.c.bf16 %v2247, %v2246
      %v2342 = vpack.c.bf16 %v2249, %v2248
      %v2343 = vpack.c.bf16 %v2251, %v2250
      %v2344 = vpack.c.bf16 %v2253, %v2252
      %v2345 = vpack.c.bf16 %v2255, %v2254
      %v2346 = vpack.c.bf16 %v2257, %v2256
      %v2347 = vpack.c.bf16 %v2259, %v2258
      %v2348 = vpack.c.bf16 %v2261, %v2260
      %v2349 = vpack.c.bf16 %v2263, %v2262
      %v2350 = vpack.c.bf16 %v2265, %v2264
      %v2351 = vpack.c.bf16 %v2267, %v2266
      %v2352 = vpack.c.bf16 %v2269, %v2268
      %v2353 = vpack.c.bf16 %v2271, %v2270
      %v2354 = vpack.c.bf16 %v2273, %v2272
      %v2355 = vpack.c.bf16 %v2275, %v2274
      %v2356 = vpack.c.bf16 %v2277, %v2276
      %v2357 = vpack.c.bf16 %v2279, %v2278
      %v2358 = vpack.c.bf16 %v2281, %v2280
      %v2359 = vpack.c.bf16 %v2283, %v2282
      %v2360 = vpack.c.bf16 %v2285, %v2284
      %v2361 = vpack.c.bf16 %v2287, %v2286
      %v2362 = vpack.c.bf16 %v2289, %v2288
      %v2363 = vpack.c.bf16 %v2291, %v2290
      %v2364 = vpack.c.bf16 %v2293, %v2292
      %v2365 = vpack.c.bf16 %v2295, %v2294
      %v2366 = vpack.c.bf16 %v2297, %v2296
      %v2367 = vpack.c.bf16 %v2299, %v2298
      %v2368 = vpack.c.bf16 %v2301, %v2300
      %v2369 = vpack.c.bf16 %v2303, %v2302
      %v2370 = vpack.c.bf16 %v2305, %v2304
      %v2371 = vpack.c.bf16 %v2307, %v2306
      %v2372 = vunpack.c.l.bf16 %v314
      %v2373 = vlaneseq
      %v2374 = vshrl.u32 %v2373, 7
      %v2375 = vsub.s32 0, %v2374
      %v2376 = vrot.slane %v2372, %v2375
      %v2393 = vunpack.c.l.b16 %v296
      %v2394 = vunpack.c.l.b16 %v297
      %v2395 = vunpack.c.l.b16 %v298
      %v2396 = vunpack.c.l.b16 %v299
      %v2397 = vunpack.c.l.b16 %v300
      %v2398 = vunpack.c.l.b16 %v301
      %v2399 = vunpack.c.l.b16 %v302
      %v2400 = vunpack.c.l.b16 %v303
      %v2401 = vunpack.c.l.b16 %v304
      %v2402 = vunpack.c.l.b16 %v305
      %v2403 = vunpack.c.l.b16 %v306
      %v2404 = vunpack.c.l.b16 %v307
      %v2405 = vunpack.c.l.b16 %v308
      %v2406 = vunpack.c.l.b16 %v309
      %v2407 = vunpack.c.l.b16 %v310
      %v2408 = vunpack.c.l.b16 %v311
      %v2409 = vpack.c.b16 %v2394, %v2393
      %v2410 = vpack.c.b16 %v2396, %v2395
      %v2411 = vpack.c.b16 %v2398, %v2397
      %v2412 = vpack.c.b16 %v2400, %v2399
      %v2413 = vpack.c.b16 %v2402, %v2401
      %v2414 = vpack.c.b16 %v2404, %v2403
      %v2415 = vpack.c.b16 %v2406, %v2405
      %v2416 = vpack.c.b16 %v2408, %v2407
      %2425 = vmatprep.subr.bf16.mxu0 0
      %2426 = vmatpush1.bf16.msra.mxu0 %v2409
      %2427 = vmatprep.subr.bf16.mxu0 0
      %2428 = vmatpush1.bf16.msra.mxu0 %v2410
      %2429 = vmatprep.subr.bf16.mxu0 0
      %2430 = vmatpush1.bf16.msra.mxu0 %v2411
      %2431 = vmatprep.subr.bf16.mxu0 0
      %2432 = vmatpush1.bf16.msra.mxu0 %v2412
      %2433 = vmatprep.subr.bf16.mxu0 0
      %2434 = vmatpush1.bf16.msra.mxu0 %v2413
      %2435 = vmatprep.subr.bf16.mxu0 0
      %2436 = vmatpush1.bf16.msra.mxu0 %v2414
      %2437 = vmatprep.subr.bf16.mxu0 0
      %2438 = vmatpush1.bf16.msra.mxu0 %v2415
      %2439 = vmatprep.subr.bf16.mxu0 0
      %2440 = vmatpush1.bf16.msra.mxu0 %v2416
      %2441 = vmatprep.subr.bf16.mxu0 0
      %2442 = vmatpush1.bf16.msra.mxu0 0
      %2443 = vmatprep.subr.bf16.mxu0 0
      %2444 = vmatpush1.bf16.msra.mxu0 0
      %2445 = vmatprep.subr.bf16.mxu0 0
      %2446 = vmatpush1.bf16.msra.mxu0 0
      %2447 = vmatprep.subr.bf16.mxu0 0
      %2448 = vmatpush1.bf16.msra.mxu0 0
      %2449 = vmatprep.subr.bf16.mxu0 0
      %2450 = vmatpush1.bf16.msra.mxu0 0
      %2451 = vmatprep.subr.bf16.mxu0 0
      %2452 = vmatpush1.bf16.msra.mxu0 0
      %2453 = vmatprep.subr.bf16.mxu0 0
      %2454 = vmatpush1.bf16.msra.mxu0 0
      %2455 = vmatprep.subr.bf16.mxu0 0
      %2456 = vmatpush1.bf16.msra.mxu0 0
      %2457 = vmatprep.mubr.bf16.mxu0 0
      %2458 = vmatmul.mubr.bf16.gmra.mrb[0].mxu0 %v2308
      %v2459 = vpop.f32.mrb[0].mxu0
      %v2460 = vadd.f32 %v2376, %v2459
      %v2461 = vpop.f32.mrb[0].mxu0
      %v2462 = vpop.f32.mrb[0].mxu0
      %v2463 = vadd.f32 %v2376, %v2462
      %v2464 = vpop.f32.mrb[0].mxu0
      %2465 = vmatprep.mubr.bf16.mxu0 0
      %2466 = vmatmul.mubr.bf16.gmra.mrb[0].mxu0 %v2309
      %v2467 = vpop.f32.mrb[0].mxu0
      %v2468 = vadd.f32 %v2376, %v2467
      %v2469 = vpop.f32.mrb[0].mxu0
      %v2470 = vpop.f32.mrb[0].mxu0
      %v2471 = vadd.f32 %v2376, %v2470
      %v2472 = vpop.f32.mrb[0].mxu0
      %2473 = vmatprep.mubr.bf16.mxu0 0
      %2474 = vmatmul.mubr.bf16.gmra.mrb[0].mxu0 %v2310
      %v2475 = vpop.f32.mrb[0].mxu0
      %v2476 = vadd.f32 %v2376, %v2475
      %v2477 = vpop.f32.mrb[0].mxu0
      %v2478 = vpop.f32.mrb[0].mxu0
      %v2479 = vadd.f32 %v2376, %v2478
      %v2480 = vpop.f32.mrb[0].mxu0
      %2481 = vmatprep.mubr.bf16.mxu0 0
      %2482 = vmatmul.mubr.bf16.gmra.mrb[0].mxu0 %v2311
      %v2483 = vpop.f32.mrb[0].mxu0
      %v2484 = vadd.f32 %v2376, %v2483
      %v2485 = vpop.f32.mrb[0].mxu0
      %v2486 = vpop.f32.mrb[0].mxu0
      %v2487 = vadd.f32 %v2376, %v2486
      %v2488 = vpop.f32.mrb[0].mxu0
      %2489 = vmatprep.mubr.bf16.mxu0 0
      %2490 = vmatmul.mubr.bf16.gmra.mrb[0].mxu0 %v2312
      %v2491 = vpop.f32.mrb[0].mxu0
      %v2492 = vadd.f32 %v2376, %v2491
      %v2493 = vpop.f32.mrb[0].mxu0
      %v2494 = vpop.f32.mrb[0].mxu0
      %v2495 = vadd.f32 %v2376, %v2494
      %v2496 = vpop.f32.mrb[0].mxu0
      %2497 = vmatprep.mubr.bf16.mxu0 0
      %2498 = vmatmul.mubr.bf16.gmra.mrb[0].mxu0 %v2313
      %v2499 = vpop.f32.mrb[0].mxu0
      %v2500 = vadd.f32 %v2376, %v2499
      %v2501 = vpop.f32.mrb[0].mxu0
      %v2502 = vpop.f32.mrb[0].mxu0
      %v2503 = vadd.f32 %v2376, %v2502
      %v2504 = vpop.f32.mrb[0].mxu0
      %2505 = vmatprep.mubr.bf16.mxu0 0
      %2506 = vmatmul.mubr.bf16.gmra.mrb[0].mxu0 %v2314
      %v2507 = vpop.f32.mrb[0].mxu0
      %v2508 = vadd.f32 %v2376, %v2507
      %v2509 = vpop.f32.mrb[0].mxu0
      %v2510 = vpop.f32.mrb[0].mxu0
      %v2511 = vadd.f32 %v2376, %v2510
      %v2512 = vpop.f32.mrb[0].mxu0
      %2513 = vmatprep.mubr.bf16.mxu0 0
      %2514 = vmatmul.mubr.bf16.gmra.mrb[0].mxu0 %v2315
      %v2515 = vpop.f32.mrb[0].mxu0
      %v2516 = vadd.f32 %v2376, %v2515
      %v2517 = vpop.f32.mrb[0].mxu0
      %v2518 = vpop.f32.mrb[0].mxu0
      %v2519 = vadd.f32 %v2376, %v2518
      %v2520 = vpop.f32.mrb[0].mxu0
      %2521 = vmatprep.mubr.bf16.mxu0 0
      %2522 = vmatmul.mubr.bf16.gmra.mrb[0].mxu0 %v2316
      %v2523 = vpop.f32.mrb[0].mxu0
      %v2524 = vadd.f32 %v2376, %v2523
      %v2525 = vpop.f32.mrb[0].mxu0
      %v2526 = vpop.f32.mrb[0].mxu0
      %v2527 = vadd.f32 %v2376, %v2526
      %v2528 = vpop.f32.mrb[0].mxu0
      %2529 = vmatprep.mubr.bf16.mxu0 0
      %2530 = vmatmul.mubr.bf16.gmra.mrb[0].mxu0 %v2317
      %v2531 = vpop.f32.mrb[0].mxu0
      %v2532 = vadd.f32 %v2376, %v2531
      %v2533 = vpop.f32.mrb[0].mxu0
      %v2534 = vpop.f32.mrb[0].mxu0
      %v2535 = vadd.f32 %v2376, %v2534
      %v2536 = vpop.f32.mrb[0].mxu0
      %2537 = vmatprep.mubr.bf16.mxu0 0
      %2538 = vmatmul.mubr.bf16.gmra.mrb[0].mxu0 %v2318
      %v2539 = vpop.f32.mrb[0].mxu0
      %v2540 = vadd.f32 %v2376, %v2539
      %v2541 = vpop.f32.mrb[0].mxu0
      %v2542 = vpop.f32.mrb[0].mxu0
      %v2543 = vadd.f32 %v2376, %v2542
      %v2544 = vpop.f32.mrb[0].mxu0
      %2545 = vmatprep.mubr.bf16.mxu0 0
      %2546 = vmatmul.mubr.bf16.gmra.mrb[0].mxu0 %v2319
      %v2547 = vpop.f32.mrb[0].mxu0
      %v2548 = vadd.f32 %v2376, %v2547
      %v2549 = vpop.f32.mrb[0].mxu0
      %v2550 = vpop.f32.mrb[0].mxu0
      %v2551 = vadd.f32 %v2376, %v2550
      %v2552 = vpop.f32.mrb[0].mxu0
      %2553 = vmatprep.mubr.bf16.mxu0 0
      %2554 = vmatmul.mubr.bf16.gmra.mrb[0].mxu0 %v2320
      %v2555 = vpop.f32.mrb[0].mxu0
      %v2556 = vadd.f32 %v2376, %v2555
      %v2557 = vpop.f32.mrb[0].mxu0
      %v2558 = vpop.f32.mrb[0].mxu0
      %v2559 = vadd.f32 %v2376, %v2558
      %v2560 = vpop.f32.mrb[0].mxu0
      %2561 = vmatprep.mubr.bf16.mxu0 0
      %2562 = vmatmul.mubr.bf16.gmra.mrb[0].mxu0 %v2321
      %v2563 = vpop.f32.mrb[0].mxu0
      %v2564 = vadd.f32 %v2376, %v2563
      %v2565 = vpop.f32.mrb[0].mxu0
      %v2566 = vpop.f32.mrb[0].mxu0
      %v2567 = vadd.f32 %v2376, %v2566
      %v2568 = vpop.f32.mrb[0].mxu0
      %2569 = vmatprep.mubr.bf16.mxu0 0
      %2570 = vmatmul.mubr.bf16.gmra.mrb[0].mxu0 %v2322
      %v2571 = vpop.f32.mrb[0].mxu0
      %v2572 = vadd.f32 %v2376, %v2571
      %v2573 = vpop.f32.mrb[0].mxu0
      %v2574 = vpop.f32.mrb[0].mxu0
      %v2575 = vadd.f32 %v2376, %v2574
      %v2576 = vpop.f32.mrb[0].mxu0
      %2577 = vmatprep.mubr.bf16.mxu0 0
      %2578 = vmatmul.mubr.bf16.gmra.mrb[0].mxu0 %v2323
      %v2579 = vpop.f32.mrb[0].mxu0
      %v2580 = vadd.f32 %v2376, %v2579
      %v2581 = vpop.f32.mrb[0].mxu0
      %v2582 = vpop.f32.mrb[0].mxu0
      %v2583 = vadd.f32 %v2376, %v2582
      %v2584 = vpop.f32.mrb[0].mxu0
      %2585 = vmatprep.mubr.bf16.mxu0 0
      %2586 = vmatmul.mubr.bf16.gmra.mrb[0].mxu0 %v2324
      %v2587 = vpop.f32.mrb[0].mxu0
      %v2588 = vadd.f32 %v2376, %v2587
      %v2589 = vpop.f32.mrb[0].mxu0
      %v2590 = vpop.f32.mrb[0].mxu0
      %v2591 = vadd.f32 %v2376, %v2590
      %v2592 = vpop.f32.mrb[0].mxu0
      %2593 = vmatprep.mubr.bf16.mxu0 0
      %2594 = vmatmul.mubr.bf16.gmra.mrb[0].mxu0 %v2325
      %v2595 = vpop.f32.mrb[0].mxu0
      %v2596 = vadd.f32 %v2376, %v2595
      %v2597 = vpop.f32.mrb[0].mxu0
      %v2598 = vpop.f32.mrb[0].mxu0
      %v2599 = vadd.f32 %v2376, %v2598
      %v2600 = vpop.f32.mrb[0].mxu0
      %2601 = vmatprep.mubr.bf16.mxu0 0
      %2602 = vmatmul.mubr.bf16.gmra.mrb[0].mxu0 %v2326
      %v2603 = vpop.f32.mrb[0].mxu0
      %v2604 = vadd.f32 %v2376, %v2603
      %v2605 = vpop.f32.mrb[0].mxu0
      %v2606 = vpop.f32.mrb[0].mxu0
      %v2607 = vadd.f32 %v2376, %v2606
      %v2608 = vpop.f32.mrb[0].mxu0
      %2609 = vmatprep.mubr.bf16.mxu0 0
      %2610 = vmatmul.mubr.bf16.gmra.mrb[0].mxu0 %v2327
      %v2611 = vpop.f32.mrb[0].mxu0
      %v2612 = vadd.f32 %v2376, %v2611
      %v2613 = vpop.f32.mrb[0].mxu0
      %v2614 = vpop.f32.mrb[0].mxu0
      %v2615 = vadd.f32 %v2376, %v2614
      %v2616 = vpop.f32.mrb[0].mxu0
      %2617 = vmatprep.mubr.bf16.mxu0 0
      %2618 = vmatmul.mubr.bf16.gmra.mrb[0].mxu0 %v2328
      %v2619 = vpop.f32.mrb[0].mxu0
      %v2620 = vadd.f32 %v2376, %v2619
      %v2621 = vpop.f32.mrb[0].mxu0
      %v2622 = vpop.f32.mrb[0].mxu0
      %v2623 = vadd.f32 %v2376, %v2622
      %v2624 = vpop.f32.mrb[0].mxu0
      %2625 = vmatprep.mubr.bf16.mxu0 0
      %2626 = vmatmul.mubr.bf16.gmra.mrb[0].mxu0 %v2329
      %v2627 = vpop.f32.mrb[0].mxu0
      %v2628 = vadd.f32 %v2376, %v2627
      %v2629 = vpop.f32.mrb[0].mxu0
      %v2630 = vpop.f32.mrb[0].mxu0
      %v2631 = vadd.f32 %v2376, %v2630
      %v2632 = vpop.f32.mrb[0].mxu0
      %2633 = vmatprep.mubr.bf16.mxu0 0
      %2634 = vmatmul.mubr.bf16.gmra.mrb[0].mxu0 %v2330
      %v2635 = vpop.f32.mrb[0].mxu0
      %v2636 = vadd.f32 %v2376, %v2635
      %v2637 = vpop.f32.mrb[0].mxu0
      %v2638 = vpop.f32.mrb[0].mxu0
      %v2639 = vadd.f32 %v2376, %v2638
      %v2640 = vpop.f32.mrb[0].mxu0
      %2641 = vmatprep.mubr.bf16.mxu0 0
      %2642 = vmatmul.mubr.bf16.gmra.mrb[0].mxu0 %v2331
      %v2643 = vpop.f32.mrb[0].mxu0
      %v2644 = vadd.f32 %v2376, %v2643
      %v2645 = vpop.f32.mrb[0].mxu0
      %v2646 = vpop.f32.mrb[0].mxu0
      %v2647 = vadd.f32 %v2376, %v2646
      %v2648 = vpop.f32.mrb[0].mxu0
      %2649 = vmatprep.mubr.bf16.mxu0 0
      %2650 = vmatmul.mubr.bf16.gmra.mrb[0].mxu0 %v2332
      %v2651 = vpop.f32.mrb[0].mxu0
      %v2652 = vadd.f32 %v2376, %v2651
      %v2653 = vpop.f32.mrb[0].mxu0
      %v2654 = vpop.f32.mrb[0].mxu0
      %v2655 = vadd.f32 %v2376, %v2654
      %v2656 = vpop.f32.mrb[0].mxu0
      %2657 = vmatprep.mubr.bf16.mxu0 0
      %2658 = vmatmul.mubr.bf16.gmra.mrb[0].mxu0 %v2333
      %v2659 = vpop.f32.mrb[0].mxu0
      %v2660 = vadd.f32 %v2376, %v2659
      %v2661 = vpop.f32.mrb[0].mxu0
      %v2662 = vpop.f32.mrb[0].mxu0
      %v2663 = vadd.f32 %v2376, %v2662
      %v2664 = vpop.f32.mrb[0].mxu0
      %2665 = vmatprep.mubr.bf16.mxu0 0
      %2666 = vmatmul.mubr.bf16.gmra.mrb[0].mxu0 %v2334
      %v2667 = vpop.f32.mrb[0].mxu0
      %v2668 = vadd.f32 %v2376, %v2667
      %v2669 = vpop.f32.mrb[0].mxu0
      %v2670 = vpop.f32.mrb[0].mxu0
      %v2671 = vadd.f32 %v2376, %v2670
      %v2672 = vpop.f32.mrb[0].mxu0
      %2673 = vmatprep.mubr.bf16.mxu0 0
      %2674 = vmatmul.mubr.bf16.gmra.mrb[0].mxu0 %v2335
      %v2675 = vpop.f32.mrb[0].mxu0
      %v2676 = vadd.f32 %v2376, %v2675
      %v2677 = vpop.f32.mrb[0].mxu0
      %v2678 = vpop.f32.mrb[0].mxu0
      %v2679 = vadd.f32 %v2376, %v2678
      %v2680 = vpop.f32.mrb[0].mxu0
      %2681 = vmatprep.mubr.bf16.mxu0 0
      %2682 = vmatmul.mubr.bf16.gmra.mrb[0].mxu0 %v2336
      %v2683 = vpop.f32.mrb[0].mxu0
      %v2684 = vadd.f32 %v2376, %v2683
      %v2685 = vpop.f32.mrb[0].mxu0
      %v2686 = vpop.f32.mrb[0].mxu0
      %v2687 = vadd.f32 %v2376, %v2686
      %v2688 = vpop.f32.mrb[0].mxu0
      %2689 = vmatprep.mubr.bf16.mxu0 0
      %2690 = vmatmul.mubr.bf16.gmra.mrb[0].mxu0 %v2337
      %v2691 = vpop.f32.mrb[0].mxu0
      %v2692 = vadd.f32 %v2376, %v2691
      %v2693 = vpop.f32.mrb[0].mxu0
      %v2694 = vpop.f32.mrb[0].mxu0
      %v2695 = vadd.f32 %v2376, %v2694
      %v2696 = vpop.f32.mrb[0].mxu0
      %2697 = vmatprep.mubr.bf16.mxu0 0
      %2698 = vmatmul.mubr.bf16.gmra.mrb[0].mxu0 %v2338
      %v2699 = vpop.f32.mrb[0].mxu0
      %v2700 = vadd.f32 %v2376, %v2699
      %v2701 = vpop.f32.mrb[0].mxu0
      %v2702 = vpop.f32.mrb[0].mxu0
      %v2703 = vadd.f32 %v2376, %v2702
      %v2704 = vpop.f32.mrb[0].mxu0
      %2705 = vmatprep.mubr.bf16.mxu0 0
      %2706 = vmatmul.mubr.bf16.gmra.mrb[0].mxu0 %v2339
      %v2707 = vpop.f32.mrb[0].mxu0
      %v2708 = vadd.f32 %v2376, %v2707
      %v2709 = vpop.f32.mrb[0].mxu0
      %v2710 = vpop.f32.mrb[0].mxu0
      %v2711 = vadd.f32 %v2376, %v2710
      %v2712 = vpop.f32.mrb[0].mxu0
      %2713 = vmatprep.mubr.bf16.mxu0 0
      %2714 = vmatmul.mubr.bf16.gmra.mrb[0].mxu0 %v2340
      %v2715 = vpop.f32.mrb[0].mxu0
      %v2716 = vadd.f32 %v2376, %v2715
      %v2717 = vpop.f32.mrb[0].mxu0
      %v2718 = vpop.f32.mrb[0].mxu0
      %v2719 = vadd.f32 %v2376, %v2718
      %v2720 = vpop.f32.mrb[0].mxu0
      %2721 = vmatprep.mubr.bf16.mxu0 0
      %2722 = vmatmul.mubr.bf16.gmra.mrb[0].mxu0 %v2341
      %v2723 = vpop.f32.mrb[0].mxu0
      %v2724 = vadd.f32 %v2376, %v2723
      %v2725 = vpop.f32.mrb[0].mxu0
      %v2726 = vpop.f32.mrb[0].mxu0
      %v2727 = vadd.f32 %v2376, %v2726
      %v2728 = vpop.f32.mrb[0].mxu0
      %2729 = vmatprep.mubr.bf16.mxu0 0
      %2730 = vmatmul.mubr.bf16.gmra.mrb[0].mxu0 %v2342
      %v2731 = vpop.f32.mrb[0].mxu0
      %v2732 = vadd.f32 %v2376, %v2731
      %v2733 = vpop.f32.mrb[0].mxu0
      %v2734 = vpop.f32.mrb[0].mxu0
      %v2735 = vadd.f32 %v2376, %v2734
      %v2736 = vpop.f32.mrb[0].mxu0
      %2737 = vmatprep.mubr.bf16.mxu0 0
      %2738 = vmatmul.mubr.bf16.gmra.mrb[0].mxu0 %v2343
      %v2739 = vpop.f32.mrb[0].mxu0
      %v2740 = vadd.f32 %v2376, %v2739
      %v2741 = vpop.f32.mrb[0].mxu0
      %v2742 = vpop.f32.mrb[0].mxu0
      %v2743 = vadd.f32 %v2376, %v2742
      %v2744 = vpop.f32.mrb[0].mxu0
      %2745 = vmatprep.mubr.bf16.mxu0 0
      %2746 = vmatmul.mubr.bf16.gmra.mrb[0].mxu0 %v2344
      %v2747 = vpop.f32.mrb[0].mxu0
      %v2748 = vadd.f32 %v2376, %v2747
      %v2749 = vpop.f32.mrb[0].mxu0
      %v2750 = vpop.f32.mrb[0].mxu0
      %v2751 = vadd.f32 %v2376, %v2750
      %v2752 = vpop.f32.mrb[0].mxu0
      %2753 = vmatprep.mubr.bf16.mxu0 0
      %2754 = vmatmul.mubr.bf16.gmra.mrb[0].mxu0 %v2345
      %v2755 = vpop.f32.mrb[0].mxu0
      %v2756 = vadd.f32 %v2376, %v2755
      %v2757 = vpop.f32.mrb[0].mxu0
      %v2758 = vpop.f32.mrb[0].mxu0
      %v2759 = vadd.f32 %v2376, %v2758
      %v2760 = vpop.f32.mrb[0].mxu0
      %2761 = vmatprep.mubr.bf16.mxu0 0
      %2762 = vmatmul.mubr.bf16.gmra.mrb[0].mxu0 %v2346
      %v2763 = vpop.f32.mrb[0].mxu0
      %v2764 = vadd.f32 %v2376, %v2763
      %v2765 = vpop.f32.mrb[0].mxu0
      %v2766 = vpop.f32.mrb[0].mxu0
      %v2767 = vadd.f32 %v2376, %v2766
      %v2768 = vpop.f32.mrb[0].mxu0
      %2769 = vmatprep.mubr.bf16.mxu0 0
      %2770 = vmatmul.mubr.bf16.gmra.mrb[0].mxu0 %v2347
      %v2771 = vpop.f32.mrb[0].mxu0
      %v2772 = vadd.f32 %v2376, %v2771
      %v2773 = vpop.f32.mrb[0].mxu0
      %v2774 = vpop.f32.mrb[0].mxu0
      %v2775 = vadd.f32 %v2376, %v2774
      %v2776 = vpop.f32.mrb[0].mxu0
      %2777 = vmatprep.mubr.bf16.mxu0 0
      %2778 = vmatmul.mubr.bf16.gmra.mrb[0].mxu0 %v2348
      %v2779 = vpop.f32.mrb[0].mxu0
      %v2780 = vadd.f32 %v2376, %v2779
      %v2781 = vpop.f32.mrb[0].mxu0
      %v2782 = vpop.f32.mrb[0].mxu0
      %v2783 = vadd.f32 %v2376, %v2782
      %v2784 = vpop.f32.mrb[0].mxu0
      %2785 = vmatprep.mubr.bf16.mxu0 0
      %2786 = vmatmul.mubr.bf16.gmra.mrb[0].mxu0 %v2349
      %v2787 = vpop.f32.mrb[0].mxu0
      %v2788 = vadd.f32 %v2376, %v2787
      %v2789 = vpop.f32.mrb[0].mxu0
      %v2790 = vpop.f32.mrb[0].mxu0
      %v2791 = vadd.f32 %v2376, %v2790
      %v2792 = vpop.f32.mrb[0].mxu0
      %2793 = vmatprep.mubr.bf16.mxu0 0
      %2794 = vmatmul.mubr.bf16.gmra.mrb[0].mxu0 %v2350
      %v2795 = vpop.f32.mrb[0].mxu0
      %v2796 = vadd.f32 %v2376, %v2795
      %v2797 = vpop.f32.mrb[0].mxu0
      %v2798 = vpop.f32.mrb[0].mxu0
      %v2799 = vadd.f32 %v2376, %v2798
      %v2800 = vpop.f32.mrb[0].mxu0
      %2801 = vmatprep.mubr.bf16.mxu0 0
      %2802 = vmatmul.mubr.bf16.gmra.mrb[0].mxu0 %v2351
      %v2803 = vpop.f32.mrb[0].mxu0
      %v2804 = vadd.f32 %v2376, %v2803
      %v2805 = vpop.f32.mrb[0].mxu0
      %v2806 = vpop.f32.mrb[0].mxu0
      %v2807 = vadd.f32 %v2376, %v2806
      %v2808 = vpop.f32.mrb[0].mxu0
      %2809 = vmatprep.mubr.bf16.mxu0 0
      %2810 = vmatmul.mubr.bf16.gmra.mrb[0].mxu0 %v2352
      %v2811 = vpop.f32.mrb[0].mxu0
      %v2812 = vadd.f32 %v2376, %v2811
      %v2813 = vpop.f32.mrb[0].mxu0
      %v2814 = vpop.f32.mrb[0].mxu0
      %v2815 = vadd.f32 %v2376, %v2814
      %v2816 = vpop.f32.mrb[0].mxu0
      %2817 = vmatprep.mubr.bf16.mxu0 0
      %2818 = vmatmul.mubr.bf16.gmra.mrb[0].mxu0 %v2353
      %v2819 = vpop.f32.mrb[0].mxu0
      %v2820 = vadd.f32 %v2376, %v2819
      %v2821 = vpop.f32.mrb[0].mxu0
      %v2822 = vpop.f32.mrb[0].mxu0
      %v2823 = vadd.f32 %v2376, %v2822
      %v2824 = vpop.f32.mrb[0].mxu0
      %2825 = vmatprep.mubr.bf16.mxu0 0
      %2826 = vmatmul.mubr.bf16.gmra.mrb[0].mxu0 %v2354
      %v2827 = vpop.f32.mrb[0].mxu0
      %v2828 = vadd.f32 %v2376, %v2827
      %v2829 = vpop.f32.mrb[0].mxu0
      %v2830 = vpop.f32.mrb[0].mxu0
      %v2831 = vadd.f32 %v2376, %v2830
      %v2832 = vpop.f32.mrb[0].mxu0
      %2833 = vmatprep.mubr.bf16.mxu0 0
      %2834 = vmatmul.mubr.bf16.gmra.mrb[0].mxu0 %v2355
      %v2835 = vpop.f32.mrb[0].mxu0
      %v2836 = vadd.f32 %v2376, %v2835
      %v2837 = vpop.f32.mrb[0].mxu0
      %v2838 = vpop.f32.mrb[0].mxu0
      %v2839 = vadd.f32 %v2376, %v2838
      %v2840 = vpop.f32.mrb[0].mxu0
      %2841 = vmatprep.mubr.bf16.mxu0 0
      %2842 = vmatmul.mubr.bf16.gmra.mrb[0].mxu0 %v2356
      %v2843 = vpop.f32.mrb[0].mxu0
      %v2844 = vadd.f32 %v2376, %v2843
      %v2845 = vpop.f32.mrb[0].mxu0
      %v2846 = vpop.f32.mrb[0].mxu0
      %v2847 = vadd.f32 %v2376, %v2846
      %v2848 = vpop.f32.mrb[0].mxu0
      %2849 = vmatprep.mubr.bf16.mxu0 0
      %2850 = vmatmul.mubr.bf16.gmra.mrb[0].mxu0 %v2357
      %v2851 = vpop.f32.mrb[0].mxu0
      %v2852 = vadd.f32 %v2376, %v2851
      %v2853 = vpop.f32.mrb[0].mxu0
      %v2854 = vpop.f32.mrb[0].mxu0
      %v2855 = vadd.f32 %v2376, %v2854
      %v2856 = vpop.f32.mrb[0].mxu0
      %2857 = vmatprep.mubr.bf16.mxu0 0
      %2858 = vmatmul.mubr.bf16.gmra.mrb[0].mxu0 %v2358
      %v2859 = vpop.f32.mrb[0].mxu0
      %v2860 = vadd.f32 %v2376, %v2859
      %v2861 = vpop.f32.mrb[0].mxu0
      %v2862 = vpop.f32.mrb[0].mxu0
      %v2863 = vadd.f32 %v2376, %v2862
      %v2864 = vpop.f32.mrb[0].mxu0
      %2865 = vmatprep.mubr.bf16.mxu0 0
      %2866 = vmatmul.mubr.bf16.gmra.mrb[0].mxu0 %v2359
      %v2867 = vpop.f32.mrb[0].mxu0
      %v2868 = vadd.f32 %v2376, %v2867
      %v2869 = vpop.f32.mrb[0].mxu0
      %v2870 = vpop.f32.mrb[0].mxu0
      %v2871 = vadd.f32 %v2376, %v2870
      %v2872 = vpop.f32.mrb[0].mxu0
      %2873 = vmatprep.mubr.bf16.mxu0 0
      %2874 = vmatmul.mubr.bf16.gmra.mrb[0].mxu0 %v2360
      %v2875 = vpop.f32.mrb[0].mxu0
      %v2876 = vadd.f32 %v2376, %v2875
      %v2877 = vpop.f32.mrb[0].mxu0
      %v2878 = vpop.f32.mrb[0].mxu0
      %v2879 = vadd.f32 %v2376, %v2878
      %v2880 = vpop.f32.mrb[0].mxu0
      %2881 = vmatprep.mubr.bf16.mxu0 0
      %2882 = vmatmul.mubr.bf16.gmra.mrb[0].mxu0 %v2361
      %v2883 = vpop.f32.mrb[0].mxu0
      %v2884 = vadd.f32 %v2376, %v2883
      %v2885 = vpop.f32.mrb[0].mxu0
      %v2886 = vpop.f32.mrb[0].mxu0
      %v2887 = vadd.f32 %v2376, %v2886
      %v2888 = vpop.f32.mrb[0].mxu0
      %2889 = vmatprep.mubr.bf16.mxu0 0
      %2890 = vmatmul.mubr.bf16.gmra.mrb[0].mxu0 %v2362
      %v2891 = vpop.f32.mrb[0].mxu0
      %v2892 = vadd.f32 %v2376, %v2891
      %v2893 = vpop.f32.mrb[0].mxu0
      %v2894 = vpop.f32.mrb[0].mxu0
      %v2895 = vadd.f32 %v2376, %v2894
      %v2896 = vpop.f32.mrb[0].mxu0
      %2897 = vmatprep.mubr.bf16.mxu0 0
      %2898 = vmatmul.mubr.bf16.gmra.mrb[0].mxu0 %v2363
      %v2899 = vpop.f32.mrb[0].mxu0
      %v2900 = vadd.f32 %v2376, %v2899
      %v2901 = vpop.f32.mrb[0].mxu0
      %v2902 = vpop.f32.mrb[0].mxu0
      %v2903 = vadd.f32 %v2376, %v2902
      %v2904 = vpop.f32.mrb[0].mxu0
      %2905 = vmatprep.mubr.bf16.mxu0 0
      %2906 = vmatmul.mubr.bf16.gmra.mrb[0].mxu0 %v2364
      %v2907 = vpop.f32.mrb[0].mxu0
      %v2908 = vadd.f32 %v2376, %v2907
      %v2909 = vpop.f32.mrb[0].mxu0
      %v2910 = vpop.f32.mrb[0].mxu0
      %v2911 = vadd.f32 %v2376, %v2910
      %v2912 = vpop.f32.mrb[0].mxu0
      %2913 = vmatprep.mubr.bf16.mxu0 0
      %2914 = vmatmul.mubr.bf16.gmra.mrb[0].mxu0 %v2365
      %v2915 = vpop.f32.mrb[0].mxu0
      %v2916 = vadd.f32 %v2376, %v2915
      %v2917 = vpop.f32.mrb[0].mxu0
      %v2918 = vpop.f32.mrb[0].mxu0
      %v2919 = vadd.f32 %v2376, %v2918
      %v2920 = vpop.f32.mrb[0].mxu0
      %2921 = vmatprep.mubr.bf16.mxu0 0
      %2922 = vmatmul.mubr.bf16.gmra.mrb[0].mxu0 %v2366
      %v2923 = vpop.f32.mrb[0].mxu0
      %v2924 = vadd.f32 %v2376, %v2923
      %v2925 = vpop.f32.mrb[0].mxu0
      %v2926 = vpop.f32.mrb[0].mxu0
      %v2927 = vadd.f32 %v2376, %v2926
      %v2928 = vpop.f32.mrb[0].mxu0
      %2929 = vmatprep.mubr.bf16.mxu0 0
      %2930 = vmatmul.mubr.bf16.gmra.mrb[0].mxu0 %v2367
      %v2931 = vpop.f32.mrb[0].mxu0
      %v2932 = vadd.f32 %v2376, %v2931
      %v2933 = vpop.f32.mrb[0].mxu0
      %v2934 = vpop.f32.mrb[0].mxu0
      %v2935 = vadd.f32 %v2376, %v2934
      %v2936 = vpop.f32.mrb[0].mxu0
      %2937 = vmatprep.mubr.bf16.mxu0 0
      %2938 = vmatmul.mubr.bf16.gmra.mrb[0].mxu0 %v2368
      %v2939 = vpop.f32.mrb[0].mxu0
      %v2940 = vadd.f32 %v2376, %v2939
      %v2941 = vpop.f32.mrb[0].mxu0
      %v2942 = vpop.f32.mrb[0].mxu0
      %v2943 = vadd.f32 %v2376, %v2942
      %v2944 = vpop.f32.mrb[0].mxu0
      %2945 = vmatprep.mubr.bf16.mxu0 0
      %2946 = vmatmul.mubr.bf16.gmra.mrb[0].mxu0 %v2369
      %v2947 = vpop.f32.mrb[0].mxu0
      %v2948 = vadd.f32 %v2376, %v2947
      %v2949 = vpop.f32.mrb[0].mxu0
      %v2950 = vpop.f32.mrb[0].mxu0
      %v2951 = vadd.f32 %v2376, %v2950
      %v2952 = vpop.f32.mrb[0].mxu0
      %2953 = vmatprep.mubr.bf16.mxu0 0
      %2954 = vmatmul.mubr.bf16.gmra.mrb[0].mxu0 %v2370
      %v2955 = vpop.f32.mrb[0].mxu0
      %v2956 = vadd.f32 %v2376, %v2955
      %v2957 = vpop.f32.mrb[0].mxu0
      %v2958 = vpop.f32.mrb[0].mxu0
      %v2959 = vadd.f32 %v2376, %v2958
      %v2960 = vpop.f32.mrb[0].mxu0
      %2961 = vmatprep.mubr.bf16.mxu0 0
      %2962 = vmatmul.mubr.bf16.gmra.mrb[0].mxu0 %v2371
      %v2963 = vpop.f32.mrb[0].mxu0
      %v2964 = vadd.f32 %v2376, %v2963
      %v2965 = vpop.f32.mrb[0].mxu0
      %v2966 = vpop.f32.mrb[0].mxu0
      %v2967 = vadd.f32 %v2376, %v2966
      %v2968 = vpop.f32.mrb[0].mxu0
      %2969 = vdwg.mxu0
      %vm2970 = vcmask 64512
      %2971 = vst.msk [vmem:[%s145] sm:$0xff] %vm2970, %v2460
      %2972 = vst.msk [vmem:[%s145 + $0x8] sm:$0xff] %vm2970, %v2463
      %2973 = vst.msk [vmem:[%s145 + $0x10] sm:$0xff] %vm2970, %v2468
      %2974 = vst.msk [vmem:[%s145 + $0x18] sm:$0xff] %vm2970, %v2471
      %2975 = vst.msk [vmem:[%s145 + $0x20] sm:$0xff] %vm2970, %v2476
      %2976 = vst.msk [vmem:[%s145 + $0x28] sm:$0xff] %vm2970, %v2479
      %2977 = vst.msk [vmem:[%s145 + $0x30] sm:$0xff] %vm2970, %v2484
      %2978 = vst.msk [vmem:[%s145 + $0x38] sm:$0xff] %vm2970, %v2487
      %2979 = vst.msk [vmem:[%s145 + $0x40] sm:$0xff] %vm2970, %v2492
      %2980 = vst.msk [vmem:[%s145 + $0x48] sm:$0xff] %vm2970, %v2495
      %2981 = vst.msk [vmem:[%s145 + $0x50] sm:$0xff] %vm2970, %v2500
      %2982 = vst.msk [vmem:[%s145 + $0x58] sm:$0xff] %vm2970, %v2503
      %2983 = vst.msk [vmem:[%s145 + $0x60] sm:$0xff] %vm2970, %v2508
      %2984 = vst.msk [vmem:[%s145 + $0x68] sm:$0xff] %vm2970, %v2511
      %2985 = vst.msk [vmem:[%s145 + $0x70] sm:$0xff] %vm2970, %v2516
      %2986 = vst.msk [vmem:[%s145 + $0x78] sm:$0xff] %vm2970, %v2519
      %2987 = vst.msk [vmem:[%s145 + $0x80] sm:$0xff] %vm2970, %v2524
      %2988 = vst.msk [vmem:[%s145 + $0x88] sm:$0xff] %vm2970, %v2527
      %2989 = vst.msk [vmem:[%s145 + $0x90] sm:$0xff] %vm2970, %v2532
      %2990 = vst.msk [vmem:[%s145 + $0x98] sm:$0xff] %vm2970, %v2535
      %2991 = vst.msk [vmem:[%s145 + $0xa0] sm:$0xff] %vm2970, %v2540
      %2992 = vst.msk [vmem:[%s145 + $0xa8] sm:$0xff] %vm2970, %v2543
      %2993 = vst.msk [vmem:[%s145 + $0xb0] sm:$0xff] %vm2970, %v2548
      %2994 = vst.msk [vmem:[%s145 + $0xb8] sm:$0xff] %vm2970, %v2551
      %2995 = vst.msk [vmem:[%s145 + $0xc0] sm:$0xff] %vm2970, %v2556
      %2996 = vst.msk [vmem:[%s145 + $0xc8] sm:$0xff] %vm2970, %v2559
      %2997 = vst.msk [vmem:[%s145 + $0xd0] sm:$0xff] %vm2970, %v2564
      %2998 = vst.msk [vmem:[%s145 + $0xd8] sm:$0xff] %vm2970, %v2567
      %2999 = vst.msk [vmem:[%s145 + $0xe0] sm:$0xff] %vm2970, %v2572
      %3000 = vst.msk [vmem:[%s145 + $0xe8] sm:$0xff] %vm2970, %v2575
      %3001 = vst.msk [vmem:[%s145 + $0xf0] sm:$0xff] %vm2970, %v2580
      %3002 = vst.msk [vmem:[%s145 + $0xf8] sm:$0xff] %vm2970, %v2583
      %3003 = vst.msk [vmem:[%s145 + $0x100] sm:$0xff] %vm2970, %v2588
      %3004 = vst.msk [vmem:[%s145 + $0x108] sm:$0xff] %vm2970, %v2591
      %3005 = vst.msk [vmem:[%s145 + $0x110] sm:$0xff] %vm2970, %v2596
      %3006 = vst.msk [vmem:[%s145 + $0x118] sm:$0xff] %vm2970, %v2599
      %3007 = vst.msk [vmem:[%s145 + $0x120] sm:$0xff] %vm2970, %v2604
      %3008 = vst.msk [vmem:[%s145 + $0x128] sm:$0xff] %vm2970, %v2607
      %3009 = vst.msk [vmem:[%s145 + $0x130] sm:$0xff] %vm2970, %v2612
      %3010 = vst.msk [vmem:[%s145 + $0x138] sm:$0xff] %vm2970, %v2615
      %3011 = vst.msk [vmem:[%s145 + $0x140] sm:$0xff] %vm2970, %v2620
      %3012 = vst.msk [vmem:[%s145 + $0x148] sm:$0xff] %vm2970, %v2623
      %3013 = vst.msk [vmem:[%s145 + $0x150] sm:$0xff] %vm2970, %v2628
      %3014 = vst.msk [vmem:[%s145 + $0x158] sm:$0xff] %vm2970, %v2631
      %3015 = vst.msk [vmem:[%s145 + $0x160] sm:$0xff] %vm2970, %v2636
      %3016 = vst.msk [vmem:[%s145 + $0x168] sm:$0xff] %vm2970, %v2639
      %3017 = vst.msk [vmem:[%s145 + $0x170] sm:$0xff] %vm2970, %v2644
      %3018 = vst.msk [vmem:[%s145 + $0x178] sm:$0xff] %vm2970, %v2647
      %3019 = vst.msk [vmem:[%s145 + $0x180] sm:$0xff] %vm2970, %v2652
      %3020 = vst.msk [vmem:[%s145 + $0x188] sm:$0xff] %vm2970, %v2655
      %3021 = vst.msk [vmem:[%s145 + $0x190] sm:$0xff] %vm2970, %v2660
      %3022 = vst.msk [vmem:[%s145 + $0x198] sm:$0xff] %vm2970, %v2663
      %3023 = vst.msk [vmem:[%s145 + $0x1a0] sm:$0xff] %vm2970, %v2668
      %3024 = vst.msk [vmem:[%s145 + $0x1a8] sm:$0xff] %vm2970, %v2671
      %3025 = vst.msk [vmem:[%s145 + $0x1b0] sm:$0xff] %vm2970, %v2676
      %3026 = vst.msk [vmem:[%s145 + $0x1b8] sm:$0xff] %vm2970, %v2679
      %3027 = vst.msk [vmem:[%s145 + $0x1c0] sm:$0xff] %vm2970, %v2684
      %3028 = vst.msk [vmem:[%s145 + $0x1c8] sm:$0xff] %vm2970, %v2687
      %3029 = vst.msk [vmem:[%s145 + $0x1d0] sm:$0xff] %vm2970, %v2692
      %3030 = vst.msk [vmem:[%s145 + $0x1d8] sm:$0xff] %vm2970, %v2695
      %3031 = vst.msk [vmem:[%s145 + $0x1e0] sm:$0xff] %vm2970, %v2700
      %3032 = vst.msk [vmem:[%s145 + $0x1e8] sm:$0xff] %vm2970, %v2703
      %3033 = vst.msk [vmem:[%s145 + $0x1f0] sm:$0xff] %vm2970, %v2708
      %3034 = vst.msk [vmem:[%s145 + $0x1f8] sm:$0xff] %vm2970, %v2711
      %3035 = vst.msk [vmem:[%s145 + $0x200] sm:$0xff] %vm2970, %v2716
      %3036 = vst.msk [vmem:[%s145 + $0x208] sm:$0xff] %vm2970, %v2719
      %3037 = vst.msk [vmem:[%s145 + $0x210] sm:$0xff] %vm2970, %v2724
      %3038 = vst.msk [vmem:[%s145 + $0x218] sm:$0xff] %vm2970, %v2727
      %3039 = vst.msk [vmem:[%s145 + $0x220] sm:$0xff] %vm2970, %v2732
      %3040 = vst.msk [vmem:[%s145 + $0x228] sm:$0xff] %vm2970, %v2735
      %3041 = vst.msk [vmem:[%s145 + $0x230] sm:$0xff] %vm2970, %v2740
      %3042 = vst.msk [vmem:[%s145 + $0x238] sm:$0xff] %vm2970, %v2743
      %3043 = vst.msk [vmem:[%s145 + $0x240] sm:$0xff] %vm2970, %v2748
      %3044 = vst.msk [vmem:[%s145 + $0x248] sm:$0xff] %vm2970, %v2751
      %3045 = vst.msk [vmem:[%s145 + $0x250] sm:$0xff] %vm2970, %v2756
      %3046 = vst.msk [vmem:[%s145 + $0x258] sm:$0xff] %vm2970, %v2759
      %3047 = vst.msk [vmem:[%s145 + $0x260] sm:$0xff] %vm2970, %v2764
      %3048 = vst.msk [vmem:[%s145 + $0x268] sm:$0xff] %vm2970, %v2767
      %3049 = vst.msk [vmem:[%s145 + $0x270] sm:$0xff] %vm2970, %v2772
      %3050 = vst.msk [vmem:[%s145 + $0x278] sm:$0xff] %vm2970, %v2775
      %3051 = vst.msk [vmem:[%s145 + $0x280] sm:$0xff] %vm2970, %v2780
      %3052 = vst.msk [vmem:[%s145 + $0x288] sm:$0xff] %vm2970, %v2783
      %3053 = vst.msk [vmem:[%s145 + $0x290] sm:$0xff] %vm2970, %v2788
      %3054 = vst.msk [vmem:[%s145 + $0x298] sm:$0xff] %vm2970, %v2791
      %3055 = vst.msk [vmem:[%s145 + $0x2a0] sm:$0xff] %vm2970, %v2796
      %3056 = vst.msk [vmem:[%s145 + $0x2a8] sm:$0xff] %vm2970, %v2799
      %3057 = vst.msk [vmem:[%s145 + $0x2b0] sm:$0xff] %vm2970, %v2804
      %3058 = vst.msk [vmem:[%s145 + $0x2b8] sm:$0xff] %vm2970, %v2807
      %3059 = vst.msk [vmem:[%s145 + $0x2c0] sm:$0xff] %vm2970, %v2812
      %3060 = vst.msk [vmem:[%s145 + $0x2c8] sm:$0xff] %vm2970, %v2815
      %3061 = vst.msk [vmem:[%s145 + $0x2d0] sm:$0xff] %vm2970, %v2820
      %3062 = vst.msk [vmem:[%s145 + $0x2d8] sm:$0xff] %vm2970, %v2823
      %3063 = vst.msk [vmem:[%s145 + $0x2e0] sm:$0xff] %vm2970, %v2828
      %3064 = vst.msk [vmem:[%s145 + $0x2e8] sm:$0xff] %vm2970, %v2831
      %3065 = vst.msk [vmem:[%s145 + $0x2f0] sm:$0xff] %vm2970, %v2836
      %3066 = vst.msk [vmem:[%s145 + $0x2f8] sm:$0xff] %vm2970, %v2839
      %3067 = vst.msk [vmem:[%s145 + $0x300] sm:$0xff] %vm2970, %v2844
      %3068 = vst.msk [vmem:[%s145 + $0x308] sm:$0xff] %vm2970, %v2847
      %3069 = vst.msk [vmem:[%s145 + $0x310] sm:$0xff] %vm2970, %v2852
      %3070 = vst.msk [vmem:[%s145 + $0x318] sm:$0xff] %vm2970, %v2855
      %3071 = vst.msk [vmem:[%s145 + $0x320] sm:$0xff] %vm2970, %v2860
      %3072 = vst.msk [vmem:[%s145 + $0x328] sm:$0xff] %vm2970, %v2863
      %3073 = vst.msk [vmem:[%s145 + $0x330] sm:$0xff] %vm2970, %v2868
      %3074 = vst.msk [vmem:[%s145 + $0x338] sm:$0xff] %vm2970, %v2871
      %3075 = vst.msk [vmem:[%s145 + $0x340] sm:$0xff] %vm2970, %v2876
      %3076 = vst.msk [vmem:[%s145 + $0x348] sm:$0xff] %vm2970, %v2879
      %3077 = vst.msk [vmem:[%s145 + $0x350] sm:$0xff] %vm2970, %v2884
      %3078 = vst.msk [vmem:[%s145 + $0x358] sm:$0xff] %vm2970, %v2887
      %3079 = vst.msk [vmem:[%s145 + $0x360] sm:$0xff] %vm2970, %v2892
      %3080 = vst.msk [vmem:[%s145 + $0x368] sm:$0xff] %vm2970, %v2895
      %3081 = vst.msk [vmem:[%s145 + $0x370] sm:$0xff] %vm2970, %v2900
      %3082 = vst.msk [vmem:[%s145 + $0x378] sm:$0xff] %vm2970, %v2903
      %3083 = vst.msk [vmem:[%s145 + $0x380] sm:$0xff] %vm2970, %v2908
      %3084 = vst.msk [vmem:[%s145 + $0x388] sm:$0xff] %vm2970, %v2911
      %3085 = vst.msk [vmem:[%s145 + $0x390] sm:$0xff] %vm2970, %v2916
      %3086 = vst.msk [vmem:[%s145 + $0x398] sm:$0xff] %vm2970, %v2919
      %3087 = vst.msk [vmem:[%s145 + $0x3a0] sm:$0xff] %vm2970, %v2924
      %3088 = vst.msk [vmem:[%s145 + $0x3a8] sm:$0xff] %vm2970, %v2927
      %3089 = vst.msk [vmem:[%s145 + $0x3b0] sm:$0xff] %vm2970, %v2932
      %3090 = vst.msk [vmem:[%s145 + $0x3b8] sm:$0xff] %vm2970, %v2935
      %3091 = vst.msk [vmem:[%s145 + $0x3c0] sm:$0xff] %vm2970, %v2940
      %3092 = vst.msk [vmem:[%s145 + $0x3c8] sm:$0xff] %vm2970, %v2943
      %3093 = vst.msk [vmem:[%s145 + $0x3d0] sm:$0xff] %vm2970, %v2948
      %3094 = vst.msk [vmem:[%s145 + $0x3d8] sm:$0xff] %vm2970, %v2951
      %3095 = vst.msk [vmem:[%s145 + $0x3e0] sm:$0xff] %vm2970, %v2956
      %3096 = vst.msk [vmem:[%s145 + $0x3e8] sm:$0xff] %vm2970, %v2959
      %3097 = vst.msk [vmem:[%s145 + $0x3f0] sm:$0xff] %vm2970, %v2964
      %3098 = vst.msk [vmem:[%s145 + $0x3f8] sm:$0xff] %vm2970, %v2967
      %s3099 = smul.u32 128, %s13
      %p3100 = scmp.lt.s32.totalorder %s3099, 255
      %s3101 = scalar_select %p3100, %s3099, 255
      %s3102 = smul.addr %s3101, 8
      %s3103 = scalar_lea.vmem %s2, %s3102
      // Predicated region
      $region29: #{intent_model_forward.1} parent=27 // pred_check
        %p3104 = pneg %p78
      $region30: #{intent_model_forward.1} parent=27 // pred_check_branch
        %3106 = sbr.rel (%p3104) target = $region32
      $region31: #{intent_model_forward.1} parent=27 // pred_region
        %s3107 = smul.u32 128, %s13
      $region32: #{intent_model_forward.1} parent=27 // pred_fallthru
        _
    $region28: #{intent_model_forward.1} parent=5 // pred_fallthru
      _
    %p3108 = scmp.le.s32.totalorder 2, %s8
    // Predicated region
    $region33: #{intent_model_forward.1} parent=5 // pred_check
      %p3109 = pneg %p3108
    $region34: #{intent_model_forward.1} parent=5 // pred_check_branch
      %3111 = sbr.rel (%p3109) target = $region36
    $region35: #{intent_model_forward.1} parent=5 // pred_region
      %s3112 = ssub.s32 %s8, 2
      // Predicated region
      $region37: #{intent_model_forward.1} parent=35 // pred_check
        %p3113 = pneg %p84
      $region38: #{intent_model_forward.1} parent=35 // pred_check_branch
        %3115 = sbr.rel (%p3113) target = $region40
      $region39: #{intent_model_forward.1} parent=35 // pred_region
        %s3116 = smul.u32 128, %s14
        %p3117 = scmp.lt.s32.totalorder %s3116, 255
        %s3118 = scalar_select %p3117, %s3116, 255
        %s3119 = smul.addr %s3118, 8
        %s3120 = scalar_lea.vmem %s2, %s3119
      $region40: #{intent_model_forward.1} parent=35 // pred_fallthru
        _
    $region36: #{intent_model_forward.1} parent=5 // pred_fallthru
      _
  $region6: #{intent_model_forward.1} parent=0 // loop_footer
    %s12 = sadd.s32 1, %s8
  $region7: #{intent_model_forward.1} parent=0 // loop_footer_branch
    %7 = sbr.rel target = $region3
  $region8: #{intent_model_forward.1} parent=0 // loop_exit
    _

</llo_original>
